<compile_context>
chip_gen: v6e
topology: v6e:2x2x1
jax: 0.10.0
libtpu: 0.0.40
codegen_flags: <defaults>
</compile_context>

<pallas_src>
import functools

import jax
import jax.numpy as jnp
from jax.experimental import pallas as pl
from jax.experimental.pallas import tpu as pltpu


# ------------------------------ Pallas kernel ------------------------------

def _msa_kernel(x_ref, ln_w_ref, ln_b_ref, wqkv_ref, bqkv_ref, wo_ref, bo_ref,
                o_ref, *, num_heads):
    Bb, S, D = x_ref.shape
    hd = D // num_heads

    # LayerNorm in f32 (input may be bf16), one bf16 cast for the MXU.
    x = x_ref[...].astype(jnp.float32)
    mu = jnp.mean(x, axis=-1, keepdims=True)
    var = jnp.mean(jnp.square(x - mu), axis=-1, keepdims=True)
    xln = (x - mu) * jax.lax.rsqrt(var + 1e-5) * ln_w_ref[...] + ln_b_ref[...]
    x2 = xln.reshape(Bb * S, D).astype(jnp.bfloat16)            # free reshape

    # Fused QKV projection: single lane-dense MXU op, N = 3*D.
    qkv = jnp.dot(x2, wqkv_ref[...],
                  preferred_element_type=jnp.float32) + bqkv_ref[...]  # [Bb*S, 3D]

    # D-aligned lane splits into Q / K / V, then leading-dim reshapes (free).
    q = qkv[:, :D].reshape(Bb, S, D).astype(jnp.bfloat16)
    k = qkv[:, D:2 * D].reshape(Bb, S, D).astype(jnp.bfloat16)
    v = qkv[:, 2 * D:].reshape(Bb, S, D).astype(jnp.bfloat16)

    # Attention per head; each step is one Bb-batched dot_general pair.
    # (1/sqrt(hd) already folded into the Q weights/bias.)
    ctx_heads = []
    for h in range(num_heads):
        lo, hi = h * hd, (h + 1) * hd
        qh, kh, vh = q[:, :, lo:hi], k[:, :, lo:hi], v[:, :, lo:hi]  # [Bb,S,hd]
        s = jax.lax.dot_general(qh, kh, (((2,), (2,)), ((0,), (0,))),
                                preferred_element_type=jnp.float32)  # [Bb,S,S]
        m = jnp.max(s, axis=-1, keepdims=True)
        e = jnp.exp(s - m)
        p = e * pl.reciprocal(jnp.sum(e, axis=-1, keepdims=True), approx=True)
        ctx_heads.append(
            jax.lax.dot_general(p.astype(jnp.bfloat16), vh,
                                (((2,), (1,)), ((0,), (0,))),
                                preferred_element_type=jnp.float32))  # [Bb,S,hd]

    # Concat heads back on the lane axis -> single full-depth (K=D) out-proj.
    ctx = jnp.concatenate(ctx_heads, axis=-1)                    # [Bb, S, D]
    ctx2 = ctx.reshape(Bb * S, D).astype(jnp.bfloat16)           # free reshape
    out = jnp.dot(ctx2, wo_ref[...],
                  preferred_element_type=jnp.float32) + bo_ref[...]
    o_ref[...] = out.reshape(Bb, S, D).astype(o_ref.dtype)


# --------------------------------- wrapper ---------------------------------

def _default_block_b(batch):
    """grid=(1,) on single-TC chips (v5e/v6e); one block per TC on v7x."""
    try:
        kind = jax.devices()[0].device_kind.lower()
    except Exception:  # pragma: no cover - defensive
        kind = ""
    if "v7" in kind and batch % 2 == 0 and batch >= 2:
        return batch // 2
    return batch


def multihead_self_attention_block(x, params, *, num_heads, block_b=None,
                                   out_dtype=None):
    B, S, D = x.shape
    H = num_heads
    assert D % H == 0
    hd = D // H
    if block_b is None:
        block_b = _default_block_b(B)
    assert B % block_b == 0, "batch must be divisible by block_b"
    if out_dtype is None:
        out_dtype = x.dtype

    in_w = params["in_proj_weight"]     # [3D, D]
    in_b = params["in_proj_bias"]       # [3D]
    out_w = params["out_proj_weight"]   # [D, D]
    out_b = params["out_proj_bias"]     # [D]

    scale = 1.0 / float(hd) ** 0.5
    # Trace-time (free) weight prep: transpose, fold scale into Q, fuse QKV.
    wq = in_w[:D].T * scale                                   # [D_in, D_out]
    wk = in_w[D:2 * D].T
    wv = in_w[2 * D:].T
    wqkv = jnp.concatenate([wq, wk, wv], axis=1).astype(jnp.bfloat16)  # [D, 3D]
    bqkv = jnp.concatenate([in_b[:D] * scale, in_b[D:2 * D], in_b[2 * D:]]
                           ).reshape(1, 3 * D).astype(jnp.float32)     # [1, 3D]
    wo = out_w.T.astype(jnp.bfloat16)                                   # [D, D]
    bo = out_b.reshape(1, D).astype(jnp.float32)
    ln_w = params["ln_weight"].reshape(1, D).astype(jnp.float32)
    ln_b = params["ln_bias"].reshape(1, D).astype(jnp.float32)

    kernel = functools.partial(_msa_kernel, num_heads=num_heads)

    def rep2(shape):
        return pl.BlockSpec(shape, lambda b: (0, 0))

    x_bytes = B * S * D * jnp.dtype(x.dtype).itemsize
    o_bytes = B * S * D * jnp.dtype(out_dtype).itemsize
    w_bytes = (D * 3 * D + D * D) * 2 + (3 * D + D + 2 * D) * 4
    cost = pl.CostEstimate(
        flops=2 * B * S * D * (4 * D + 2 * S),
        transcendentals=B * H * S * S,
        bytes_accessed=x_bytes + o_bytes + w_bytes,
    )

    return pl.pallas_call(
        kernel,
        out_shape=jax.ShapeDtypeStruct((B, S, D), out_dtype),
        grid=(B // block_b,),
        in_specs=[
            pl.BlockSpec((block_b, S, D), lambda b: (b, 0, 0)),   # x
            rep2((1, D)), rep2((1, D)),                           # ln w, b
            rep2((D, 3 * D)),                                     # fused wqkv
            rep2((1, 3 * D)),                                     # fused bqkv
            rep2((D, D)),                                         # wo
            rep2((1, D)),                                         # bo
        ],
        out_specs=pl.BlockSpec((block_b, S, D), lambda b: (b, 0, 0)),
        compiler_params=pltpu.CompilerParams(
            dimension_semantics=("parallel",)),
        cost_estimate=cost,
    )(x, ln_w, ln_b, wqkv, bqkv, wo, bo)


# --------------------------- pure-JAX reference ----------------------------

def msa_reference(x, params, *, num_heads):
    B, S, D = x.shape
    hd = D // num_heads
    mu = jnp.mean(x, axis=-1, keepdims=True)
    var = jnp.mean((x - mu) ** 2, axis=-1, keepdims=True)
    xln = (x - mu) * jax.lax.rsqrt(var + 1e-5) * params["ln_weight"] + params["ln_bias"]

    qkv = xln @ params["in_proj_weight"].T + params["in_proj_bias"]
    q, k, v = jnp.split(qkv, 3, axis=-1)
    q = q.reshape(B, S, num_heads, hd).transpose(0, 2, 1, 3)
    k = k.reshape(B, S, num_heads, hd).transpose(0, 2, 1, 3)
    v = v.reshape(B, S, num_heads, hd).transpose(0, 2, 1, 3)
    s = jnp.einsum("bhqd,bhkd->bhqk", q, k) / jnp.sqrt(float(hd))
    p = jax.nn.softmax(s, axis=-1)
    ctx = jnp.einsum("bhqk,bhkd->bhqd", p, v).transpose(0, 2, 1, 3).reshape(B, S, D)
    return ctx @ params["out_proj_weight"].T + params["out_proj_bias"]


# -------------------------------- param init -------------------------------

def init_params(key, *, embedding_dim):
    D = embedding_dim
    ks = jax.random.split(key, 4)
    s = 1.0 / float(D) ** 0.5

    def uni(k, shape):
        return (s * jax.random.uniform(k, shape, minval=-1.0, maxval=1.0)
                ).astype(jnp.float32)

    return {
        "ln_weight": jnp.ones((D,), jnp.float32),
        "ln_bias": jnp.zeros((D,), jnp.float32),
        "in_proj_weight": uni(ks[0], (3 * D, D)),
        "in_proj_bias": uni(ks[1], (3 * D,)),
        "out_proj_weight": uni(ks[2], (D, D)),
        "out_proj_bias": uni(ks[3], (D,)),
    }


# ----------------------------------- main -----------------------------------

if __name__ == "__main__":
    batch, seq, embedding_dim, num_heads = 4, 16, 128, 4

    key = jax.random.PRNGKey(0)
    kx, kp = jax.random.split(key)
    x = jax.random.normal(kx, (batch, seq, embedding_dim), dtype=jnp.float32)
    params = init_params(kp, embedding_dim=embedding_dim)

    out = multihead_self_attention_block(x, params, num_heads=num_heads)
    out = jax.block_until_ready(out)

    ref = jax.block_until_ready(msa_reference(x, params, num_heads=num_heads))

    assert out.shape == (batch, seq, embedding_dim), out.shape
    max_err = float(jnp.max(jnp.abs(out.astype(jnp.float32) - ref)))
    assert max_err < 2e-2, f"mismatch vs reference: {max_err}"

    print("KERNEL_OK")
</pallas_src>

<mosaic_0001>
module attributes {stable_mosaic.version = 11 : i64} {
  func.func @_msa_kernel(%arg0: i32, %arg1: memref<4x16x128xf32, #tpu.memory_space<vmem>>, %arg2: memref<1x128xf32, #tpu.memory_space<vmem>>, %arg3: memref<1x128xf32, #tpu.memory_space<vmem>>, %arg4: memref<128x384xbf16, #tpu.memory_space<vmem>>, %arg5: memref<1x384xf32, #tpu.memory_space<vmem>>, %arg6: memref<128x128xbf16, #tpu.memory_space<vmem>>, %arg7: memref<1x128xf32, #tpu.memory_space<vmem>>, %arg8: memref<4x16x128xf32, #tpu.memory_space<vmem>>) attributes {dimension_semantics = [#tpu.dimension_semantics<parallel>], iteration_bounds = array<i64: 1>, scalar_prefetch = 0 : i64, scratch_operands = 0 : i64, tpu.core_type = #tpu.core_type<tc>, window_params = [{transform_indices = @transform_0, window_bounds = array<i64: 4, 16, 128>}, {pipeline_mode = #tpu.pipeline_mode<synchronous>, transform_indices = @transform_1, window_bounds = array<i64: 1, 128>}, {pipeline_mode = #tpu.pipeline_mode<synchronous>, transform_indices = @transform_2, window_bounds = array<i64: 1, 128>}, {pipeline_mode = #tpu.pipeline_mode<synchronous>, transform_indices = @transform_3, window_bounds = array<i64: 128, 384>}, {pipeline_mode = #tpu.pipeline_mode<synchronous>, transform_indices = @transform_4, window_bounds = array<i64: 1, 384>}, {pipeline_mode = #tpu.pipeline_mode<synchronous>, transform_indices = @transform_5, window_bounds = array<i64: 128, 128>}, {pipeline_mode = #tpu.pipeline_mode<synchronous>, transform_indices = @transform_6, window_bounds = array<i64: 1, 128>}, {transform_indices = @transform_7, window_bounds = array<i64: 4, 16, 128>}]} {
    %c0 = arith.constant 0 : index
    %c0_0 = arith.constant 0 : index
    %c0_1 = arith.constant 0 : index
    %0 = vector.load %arg1[%c0, %c0_0, %c0_1] : memref<4x16x128xf32, #tpu.memory_space<vmem>>, vector<4x16x128xf32>
    %cst = arith.constant dense<0.000000e+00> : vector<4x16xf32>
    %1 = vector.multi_reduction <add>, %0, %cst [2] : vector<4x16x128xf32> to vector<4x16xf32>
    %2 = vector.shape_cast %1 : vector<4x16xf32> to vector<4x16x1xf32>
    %cst_2 = arith.constant 1.280000e+02 : f32
    %3 = vector.broadcast %cst_2 : f32 to vector<4x16x1xf32>
    %4 = arith.divf %2, %3 : vector<4x16x1xf32>
    %5 = vector.broadcast %4 : vector<4x16x1xf32> to vector<4x16x128xf32>
    %6 = arith.subf %0, %5 : vector<4x16x128xf32>
    %7 = arith.mulf %6, %6 : vector<4x16x128xf32>
    %cst_3 = arith.constant dense<0.000000e+00> : vector<4x16xf32>
    %8 = vector.multi_reduction <add>, %7, %cst_3 [2] : vector<4x16x128xf32> to vector<4x16xf32>
    %9 = vector.shape_cast %8 : vector<4x16xf32> to vector<4x16x1xf32>
    %cst_4 = arith.constant 1.280000e+02 : f32
    %10 = vector.broadcast %cst_4 : f32 to vector<4x16x1xf32>
    %11 = arith.divf %9, %10 : vector<4x16x1xf32>
    %12 = vector.broadcast %4 : vector<4x16x1xf32> to vector<4x16x128xf32>
    %13 = arith.subf %0, %12 : vector<4x16x128xf32>
    %cst_5 = arith.constant 9.99999974E-6 : f32
    %14 = vector.broadcast %cst_5 : f32 to vector<4x16x1xf32>
    %15 = arith.addf %11, %14 : vector<4x16x1xf32>
    %16 = math.rsqrt %15 : vector<4x16x1xf32>
    %17 = vector.broadcast %16 : vector<4x16x1xf32> to vector<4x16x128xf32>
    %18 = arith.mulf %13, %17 : vector<4x16x128xf32>
    %c0_6 = arith.constant 0 : index
    %c0_7 = arith.constant 0 : index
    %19 = vector.load %arg2[%c0_6, %c0_7] : memref<1x128xf32, #tpu.memory_space<vmem>>, vector<1x128xf32>
    %20 = vector.shape_cast %19 : vector<1x128xf32> to vector<1x1x128xf32>
    %21 = vector.broadcast %20 : vector<1x1x128xf32> to vector<4x16x128xf32>
    %22 = arith.mulf %18, %21 : vector<4x16x128xf32>
    %c0_8 = arith.constant 0 : index
    %c0_9 = arith.constant 0 : index
    %23 = vector.load %arg3[%c0_8, %c0_9] : memref<1x128xf32, #tpu.memory_space<vmem>>, vector<1x128xf32>
    %24 = vector.shape_cast %23 : vector<1x128xf32> to vector<1x1x128xf32>
    %25 = vector.broadcast %24 : vector<1x1x128xf32> to vector<4x16x128xf32>
    %26 = arith.addf %22, %25 : vector<4x16x128xf32>
    %27 = vector.shape_cast %26 : vector<4x16x128xf32> to vector<64x128xf32>
    %28 = arith.truncf %27 : vector<64x128xf32> to vector<64x128xbf16>
    %c0_10 = arith.constant 0 : index
    %c0_11 = arith.constant 0 : index
    %29 = vector.load %arg4[%c0_10, %c0_11] : memref<128x384xbf16, #tpu.memory_space<vmem>>, vector<128x384xbf16>
    %cst_12 = arith.constant dense<0.000000e+00> : vector<64x384xf32>
    %30 = tpu.matmul %28, %29, %cst_12 {dimension_numbers = #tpu.dot_dimension_numbers<[1], [0], [0], [1], [0, 0, 1, 1], [], []>} : vector<64x128xbf16>, vector<128x384xbf16>, vector<64x384xf32> -> vector<64x384xf32>
    %c0_13 = arith.constant 0 : index
    %c0_14 = arith.constant 0 : index
    %31 = vector.load %arg5[%c0_13, %c0_14] : memref<1x384xf32, #tpu.memory_space<vmem>>, vector<1x384xf32>
    %32 = vector.broadcast %31 : vector<1x384xf32> to vector<64x384xf32>
    %33 = arith.addf %30, %32 : vector<64x384xf32>
    %34 = vector.extract_strided_slice %33 {offsets = [0, 0], sizes = [64, 128], strides = [1, 1]} : vector<64x384xf32> to vector<64x128xf32>
    %35 = vector.shape_cast %34 : vector<64x128xf32> to vector<4x16x128xf32>
    %36 = arith.truncf %35 : vector<4x16x128xf32> to vector<4x16x128xbf16>
    %37 = vector.extract_strided_slice %33 {offsets = [0, 128], sizes = [64, 128], strides = [1, 1]} : vector<64x384xf32> to vector<64x128xf32>
    %38 = vector.shape_cast %37 : vector<64x128xf32> to vector<4x16x128xf32>
    %39 = arith.truncf %38 : vector<4x16x128xf32> to vector<4x16x128xbf16>
    %40 = vector.extract_strided_slice %33 {offsets = [0, 256], sizes = [64, 128], strides = [1, 1]} : vector<64x384xf32> to vector<64x128xf32>
    %41 = vector.shape_cast %40 : vector<64x128xf32> to vector<4x16x128xf32>
    %42 = arith.truncf %41 : vector<4x16x128xf32> to vector<4x16x128xbf16>
    %43 = vector.extract_strided_slice %36 {offsets = [0, 0, 0], sizes = [4, 16, 32], strides = [1, 1, 1]} : vector<4x16x128xbf16> to vector<4x16x32xbf16>
    %44 = vector.extract_strided_slice %39 {offsets = [0, 0, 0], sizes = [4, 16, 32], strides = [1, 1, 1]} : vector<4x16x128xbf16> to vector<4x16x32xbf16>
    %45 = vector.extract_strided_slice %42 {offsets = [0, 0, 0], sizes = [4, 16, 32], strides = [1, 1, 1]} : vector<4x16x128xbf16> to vector<4x16x32xbf16>
    %cst_15 = arith.constant dense<0.000000e+00> : vector<4x16x16xf32>
    %46 = tpu.matmul %43, %44, %cst_15 {dimension_numbers = #tpu.dot_dimension_numbers<[2], [2], [1], [1], [0, 0, 0, 1, 1, 1], [0], [0]>} : vector<4x16x32xbf16>, vector<4x16x32xbf16>, vector<4x16x16xf32> -> vector<4x16x16xf32>
    %cst_16 = arith.constant dense<0xFF800000> : vector<4x16xf32>
    %47 = vector.multi_reduction <maximumf>, %46, %cst_16 [2] : vector<4x16x16xf32> to vector<4x16xf32>
    %48 = vector.shape_cast %47 : vector<4x16xf32> to vector<4x16x1xf32>
    %49 = vector.broadcast %48 : vector<4x16x1xf32> to vector<4x16x16xf32>
    %50 = arith.subf %46, %49 : vector<4x16x16xf32>
    %51 = math.exp %50 : vector<4x16x16xf32>
    %cst_17 = arith.constant dense<0.000000e+00> : vector<4x16xf32>
    %52 = vector.multi_reduction <add>, %51, %cst_17 [2] : vector<4x16x16xf32> to vector<4x16xf32>
    %53 = vector.shape_cast %52 : vector<4x16xf32> to vector<4x16x1xf32>
    %54 = tpu.reciprocal %53 {approx = true} : vector<4x16x1xf32> -> vector<4x16x1xf32>
    %55 = vector.broadcast %54 : vector<4x16x1xf32> to vector<4x16x16xf32>
    %56 = arith.mulf %51, %55 : vector<4x16x16xf32>
    %57 = arith.truncf %56 : vector<4x16x16xf32> to vector<4x16x16xbf16>
    %cst_18 = arith.constant dense<0.000000e+00> : vector<4x16x32xf32>
    %58 = tpu.matmul %57, %45, %cst_18 {dimension_numbers = #tpu.dot_dimension_numbers<[2], [1], [1], [2], [0, 0, 0, 1, 1, 2], [0], [0]>} : vector<4x16x16xbf16>, vector<4x16x32xbf16>, vector<4x16x32xf32> -> vector<4x16x32xf32>
    %59 = vector.extract_strided_slice %36 {offsets = [0, 0, 32], sizes = [4, 16, 32], strides = [1, 1, 1]} : vector<4x16x128xbf16> to vector<4x16x32xbf16>
    %60 = vector.extract_strided_slice %39 {offsets = [0, 0, 32], sizes = [4, 16, 32], strides = [1, 1, 1]} : vector<4x16x128xbf16> to vector<4x16x32xbf16>
    %61 = vector.extract_strided_slice %42 {offsets = [0, 0, 32], sizes = [4, 16, 32], strides = [1, 1, 1]} : vector<4x16x128xbf16> to vector<4x16x32xbf16>
    %cst_19 = arith.constant dense<0.000000e+00> : vector<4x16x16xf32>
    %62 = tpu.matmul %59, %60, %cst_19 {dimension_numbers = #tpu.dot_dimension_numbers<[2], [2], [1], [1], [0, 0, 0, 1, 1, 1], [0], [0]>} : vector<4x16x32xbf16>, vector<4x16x32xbf16>, vector<4x16x16xf32> -> vector<4x16x16xf32>
    %cst_20 = arith.constant dense<0xFF800000> : vector<4x16xf32>
    %63 = vector.multi_reduction <maximumf>, %62, %cst_20 [2] : vector<4x16x16xf32> to vector<4x16xf32>
    %64 = vector.shape_cast %63 : vector<4x16xf32> to vector<4x16x1xf32>
    %65 = vector.broadcast %64 : vector<4x16x1xf32> to vector<4x16x16xf32>
    %66 = arith.subf %62, %65 : vector<4x16x16xf32>
    %67 = math.exp %66 : vector<4x16x16xf32>
    %cst_21 = arith.constant dense<0.000000e+00> : vector<4x16xf32>
    %68 = vector.multi_reduction <add>, %67, %cst_21 [2] : vector<4x16x16xf32> to vector<4x16xf32>
    %69 = vector.shape_cast %68 : vector<4x16xf32> to vector<4x16x1xf32>
    %70 = tpu.reciprocal %69 {approx = true} : vector<4x16x1xf32> -> vector<4x16x1xf32>
    %71 = vector.broadcast %70 : vector<4x16x1xf32> to vector<4x16x16xf32>
    %72 = arith.mulf %67, %71 : vector<4x16x16xf32>
    %73 = arith.truncf %72 : vector<4x16x16xf32> to vector<4x16x16xbf16>
    %cst_22 = arith.constant dense<0.000000e+00> : vector<4x16x32xf32>
    %74 = tpu.matmul %73, %61, %cst_22 {dimension_numbers = #tpu.dot_dimension_numbers<[2], [1], [1], [2], [0, 0, 0, 1, 1, 2], [0], [0]>} : vector<4x16x16xbf16>, vector<4x16x32xbf16>, vector<4x16x32xf32> -> vector<4x16x32xf32>
    %75 = vector.extract_strided_slice %36 {offsets = [0, 0, 64], sizes = [4, 16, 32], strides = [1, 1, 1]} : vector<4x16x128xbf16> to vector<4x16x32xbf16>
    %76 = vector.extract_strided_slice %39 {offsets = [0, 0, 64], sizes = [4, 16, 32], strides = [1, 1, 1]} : vector<4x16x128xbf16> to vector<4x16x32xbf16>
    %77 = vector.extract_strided_slice %42 {offsets = [0, 0, 64], sizes = [4, 16, 32], strides = [1, 1, 1]} : vector<4x16x128xbf16> to vector<4x16x32xbf16>
    %cst_23 = arith.constant dense<0.000000e+00> : vector<4x16x16xf32>
    %78 = tpu.matmul %75, %76, %cst_23 {dimension_numbers = #tpu.dot_dimension_numbers<[2], [2], [1], [1], [0, 0, 0, 1, 1, 1], [0], [0]>} : vector<4x16x32xbf16>, vector<4x16x32xbf16>, vector<4x16x16xf32> -> vector<4x16x16xf32>
    %cst_24 = arith.constant dense<0xFF800000> : vector<4x16xf32>
    %79 = vector.multi_reduction <maximumf>, %78, %cst_24 [2] : vector<4x16x16xf32> to vector<4x16xf32>
    %80 = vector.shape_cast %79 : vector<4x16xf32> to vector<4x16x1xf32>
    %81 = vector.broadcast %80 : vector<4x16x1xf32> to vector<4x16x16xf32>
    %82 = arith.subf %78, %81 : vector<4x16x16xf32>
    %83 = math.exp %82 : vector<4x16x16xf32>
    %cst_25 = arith.constant dense<0.000000e+00> : vector<4x16xf32>
    %84 = vector.multi_reduction <add>, %83, %cst_25 [2] : vector<4x16x16xf32> to vector<4x16xf32>
    %85 = vector.shape_cast %84 : vector<4x16xf32> to vector<4x16x1xf32>
    %86 = tpu.reciprocal %85 {approx = true} : vector<4x16x1xf32> -> vector<4x16x1xf32>
    %87 = vector.broadcast %86 : vector<4x16x1xf32> to vector<4x16x16xf32>
    %88 = arith.mulf %83, %87 : vector<4x16x16xf32>
    %89 = arith.truncf %88 : vector<4x16x16xf32> to vector<4x16x16xbf16>
    %cst_26 = arith.constant dense<0.000000e+00> : vector<4x16x32xf32>
    %90 = tpu.matmul %89, %77, %cst_26 {dimension_numbers = #tpu.dot_dimension_numbers<[2], [1], [1], [2], [0, 0, 0, 1, 1, 2], [0], [0]>} : vector<4x16x16xbf16>, vector<4x16x32xbf16>, vector<4x16x32xf32> -> vector<4x16x32xf32>
    %91 = vector.extract_strided_slice %36 {offsets = [0, 0, 96], sizes = [4, 16, 32], strides = [1, 1, 1]} : vector<4x16x128xbf16> to vector<4x16x32xbf16>
    %92 = vector.extract_strided_slice %39 {offsets = [0, 0, 96], sizes = [4, 16, 32], strides = [1, 1, 1]} : vector<4x16x128xbf16> to vector<4x16x32xbf16>
    %93 = vector.extract_strided_slice %42 {offsets = [0, 0, 96], sizes = [4, 16, 32], strides = [1, 1, 1]} : vector<4x16x128xbf16> to vector<4x16x32xbf16>
    %cst_27 = arith.constant dense<0.000000e+00> : vector<4x16x16xf32>
    %94 = tpu.matmul %91, %92, %cst_27 {dimension_numbers = #tpu.dot_dimension_numbers<[2], [2], [1], [1], [0, 0, 0, 1, 1, 1], [0], [0]>} : vector<4x16x32xbf16>, vector<4x16x32xbf16>, vector<4x16x16xf32> -> vector<4x16x16xf32>
    %cst_28 = arith.constant dense<0xFF800000> : vector<4x16xf32>
    %95 = vector.multi_reduction <maximumf>, %94, %cst_28 [2] : vector<4x16x16xf32> to vector<4x16xf32>
    %96 = vector.shape_cast %95 : vector<4x16xf32> to vector<4x16x1xf32>
    %97 = vector.broadcast %96 : vector<4x16x1xf32> to vector<4x16x16xf32>
    %98 = arith.subf %94, %97 : vector<4x16x16xf32>
    %99 = math.exp %98 : vector<4x16x16xf32>
    %cst_29 = arith.constant dense<0.000000e+00> : vector<4x16xf32>
    %100 = vector.multi_reduction <add>, %99, %cst_29 [2] : vector<4x16x16xf32> to vector<4x16xf32>
    %101 = vector.shape_cast %100 : vector<4x16xf32> to vector<4x16x1xf32>
    %102 = tpu.reciprocal %101 {approx = true} : vector<4x16x1xf32> -> vector<4x16x1xf32>
    %103 = vector.broadcast %102 : vector<4x16x1xf32> to vector<4x16x16xf32>
    %104 = arith.mulf %99, %103 : vector<4x16x16xf32>
    %105 = arith.truncf %104 : vector<4x16x16xf32> to vector<4x16x16xbf16>
    %cst_30 = arith.constant dense<0.000000e+00> : vector<4x16x32xf32>
    %106 = tpu.matmul %105, %93, %cst_30 {dimension_numbers = #tpu.dot_dimension_numbers<[2], [1], [1], [2], [0, 0, 0, 1, 1, 2], [0], [0]>} : vector<4x16x16xbf16>, vector<4x16x32xbf16>, vector<4x16x32xf32> -> vector<4x16x32xf32>
    %107 = tpu.concatenate %58, %74, %90, %106 in 2 : vector<4x16x32xf32>, vector<4x16x32xf32>, vector<4x16x32xf32>, vector<4x16x32xf32> -> vector<4x16x128xf32>
    %108 = vector.shape_cast %107 : vector<4x16x128xf32> to vector<64x128xf32>
    %109 = arith.truncf %108 : vector<64x128xf32> to vector<64x128xbf16>
    %c0_31 = arith.constant 0 : index
    %c0_32 = arith.constant 0 : index
    %110 = vector.load %arg6[%c0_31, %c0_32] : memref<128x128xbf16, #tpu.memory_space<vmem>>, vector<128x128xbf16>
    %cst_33 = arith.constant dense<0.000000e+00> : vector<64x128xf32>
    %111 = tpu.matmul %109, %110, %cst_33 {dimension_numbers = #tpu.dot_dimension_numbers<[1], [0], [0], [1], [0, 0, 1, 1], [], []>} : vector<64x128xbf16>, vector<128x128xbf16>, vector<64x128xf32> -> vector<64x128xf32>
    %c0_34 = arith.constant 0 : index
    %c0_35 = arith.constant 0 : index
    %112 = vector.load %arg7[%c0_34, %c0_35] : memref<1x128xf32, #tpu.memory_space<vmem>>, vector<1x128xf32>
    %113 = vector.broadcast %112 : vector<1x128xf32> to vector<64x128xf32>
    %114 = arith.addf %111, %113 : vector<64x128xf32>
    %115 = vector.shape_cast %114 : vector<64x128xf32> to vector<4x16x128xf32>
    %c0_36 = arith.constant 0 : index
    %c0_37 = arith.constant 0 : index
    %c0_38 = arith.constant 0 : index
    %116 = vector.load %arg8[%c0_36, %c0_37, %c0_38] : memref<4x16x128xf32, #tpu.memory_space<vmem>>, vector<4x16x128xf32>
    tpu.vector_store %arg8[%c0_36, %c0_37, %c0_38], %115 {strides = array<i32>} : memref<4x16x128xf32, #tpu.memory_space<vmem>>, vector<4x16x128xf32>,
    return
  }
  func.func @transform_0(%arg0: i32) -> (i32, i32, i32) {
    %c0_i32 = arith.constant 0 : i32
    %c0_i32_0 = arith.constant 0 : i32
    %c0_i32_1 = arith.constant 0 : i32
    return %arg0, %c0_i32, %c0_i32_0 : i32, i32, i32
  }
  func.func @transform_1(%arg0: i32) -> (i32, i32) {
    %c0_i32 = arith.constant 0 : i32
    %c0_i32_0 = arith.constant 0 : i32
    %c0_i32_1 = arith.constant 0 : i32
    return %c0_i32, %c0_i32_0 : i32, i32
  }
  func.func @transform_2(%arg0: i32) -> (i32, i32) {
    %c0_i32 = arith.constant 0 : i32
    %c0_i32_0 = arith.constant 0 : i32
    %c0_i32_1 = arith.constant 0 : i32
    return %c0_i32, %c0_i32_0 : i32, i32
  }
  func.func @transform_3(%arg0: i32) -> (i32, i32) {
    %c0_i32 = arith.constant 0 : i32
    %c0_i32_0 = arith.constant 0 : i32
    %c0_i32_1 = arith.constant 0 : i32
    return %c0_i32, %c0_i32_0 : i32, i32
  }
  func.func @transform_4(%arg0: i32) -> (i32, i32) {
    %c0_i32 = arith.constant 0 : i32
    %c0_i32_0 = arith.constant 0 : i32
    %c0_i32_1 = arith.constant 0 : i32
    return %c0_i32, %c0_i32_0 : i32, i32
  }
  func.func @transform_5(%arg0: i32) -> (i32, i32) {
    %c0_i32 = arith.constant 0 : i32
    %c0_i32_0 = arith.constant 0 : i32
    %c0_i32_1 = arith.constant 0 : i32
    return %c0_i32, %c0_i32_0 : i32, i32
  }
  func.func @transform_6(%arg0: i32) -> (i32, i32) {
    %c0_i32 = arith.constant 0 : i32
    %c0_i32_0 = arith.constant 0 : i32
    %c0_i32_1 = arith.constant 0 : i32
    return %c0_i32, %c0_i32_0 : i32, i32
  }
  func.func @transform_7(%arg0: i32) -> (i32, i32, i32) {
    %c0_i32 = arith.constant 0 : i32
    %c0_i32_0 = arith.constant 0 : i32
    %c0_i32_1 = arith.constant 0 : i32
    return %arg0, %c0_i32, %c0_i32_0 : i32, i32, i32
  }
}

</mosaic_0001>

<llo_original>
// kernel: tpu_custom_call.1
$region0: #{tpu_custom_call.1}
  #allocation0 [shape = 'u32[]', space=smem, size = 0x4, offset = 0x4, fixed_abs, tag = 'smem constant byte address 0x4 - core index']
  #allocation1 [shape = 'u32[144,128]{1,0:T(1,128)}', space=vmem, size = 0x12000, scoped, tag = 'internal scratch']
  %s0 = inlined_call_operand.hbm [shape: f32[4,16,128], index: 0, kind: input, shape index: {}]
  %s1 = inlined_call_operand.vmem [shape: f32[1,128], index: 1, kind: input, shape index: {}]
  %s2 = inlined_call_operand.vmem [shape: f32[1,128], index: 2, kind: input, shape index: {}]
  %s3 = inlined_call_operand.hbm [shape: bf16[128,384], index: 3, kind: input, shape index: {}]
  %s4 = inlined_call_operand.vmem [shape: f32[1,384], index: 4, kind: input, shape index: {}]
  %s5 = inlined_call_operand.hbm [shape: bf16[128,128], index: 5, kind: input, shape index: {}]
  %s6 = inlined_call_operand.vmem [shape: f32[1,128], index: 6, kind: input, shape index: {}]
  %s7 = inlined_call_operand.hbm [shape: f32[4,16,128], index: 7, kind: output, shape index: {}]
  %s8 = sld [smem:[#allocation0]]
  $region50: #{tpu_custom_call.1} parent=0
    _
  %s10 = ssub.s32 1, %s8
  %s11 = scalar_select 0, %s10, %s8
  $region1: #{tpu_custom_call.1} parent=0
    #allocation2 [shape = 'u8[32768]{0}', space=vmem, size = 0x8000, scoped, tag = 'input window, operand 0, single buffered']
    #allocation3 [shape = 's32[1]{0}', space=sflag, size = 0x4, scoped, tag = 'scoped memory for tpu_custom_call.1']
    #allocation4 [shape = 's32[1]{0}', space=sflag, size = 0x4, scoped, tag = 'scoped memory for tpu_custom_call.1']
    #allocation5 [shape = 'u8[98304]{0}', space=vmem, size = 0x18000, scoped, tag = 'input window, operand 3, single buffered']
    #allocation6 [shape = 's32[1]{0}', space=sflag, size = 0x4, scoped, tag = 'scoped memory for tpu_custom_call.1']
    #allocation7 [shape = 'u8[32768]{0}', space=vmem, size = 0x8000, scoped, tag = 'input window, operand 5, single buffered']
    #allocation8 [shape = 'u8[32768]{0}', space=vmem, size = 0x8000, scoped, tag = 'output window, operand 0, single buffered']
    %12 = vsyncpa [#allocation3], 0
    %13 = vsyncpa [#allocation6], 0
    %14 = vsyncpa [#allocation4], 0
    // Predicated region
    $region2: #{tpu_custom_call.1} parent=1 // pred_check
      _
    $region3: #{tpu_custom_call.1} parent=1 // pred_check_branch
      %16 = sbr.rel (0) target = $region5
    $region4: #{tpu_custom_call.1} parent=1 // pred_region
      %s18 = ssub.s32 1024, 1024
      %19 = vsyncadd [#allocation3], %s18
      %s20 = sshll.u32 [#allocation2], 4
      %s21 = int_to_ptr.vmem [resolvable:$true] %s20
      %26 = dma.hbm_to_vmem [thread:$0]  %s0, 1024, %s21, [#allocation3], 128, 128, 8
    $region5: #{tpu_custom_call.1} parent=1 // pred_fallthru
      _
    // Predicated region
    $region6: #{tpu_custom_call.1} parent=1 // pred_check
      _
    $region7: #{tpu_custom_call.1} parent=1 // pred_check_branch
      %28 = sbr.rel (0) target = $region9
    $region8: #{tpu_custom_call.1} parent=1 // pred_region
      _
    $region9: #{tpu_custom_call.1} parent=1 // pred_fallthru
      _
    // Predicated region
    $region10: #{tpu_custom_call.1} parent=1 // pred_check
      _
    $region11: #{tpu_custom_call.1} parent=1 // pred_check_branch
      %30 = sbr.rel (0) target = $region13
    $region12: #{tpu_custom_call.1} parent=1 // pred_region
      _
    $region13: #{tpu_custom_call.1} parent=1 // pred_fallthru
      _
    // Predicated region
    $region14: #{tpu_custom_call.1} parent=1 // pred_check
      _
    $region15: #{tpu_custom_call.1} parent=1 // pred_check_branch
      %32 = sbr.rel (0) target = $region17
    $region16: #{tpu_custom_call.1} parent=1 // pred_region
      %s34 = ssub.s32 3072, 3072
      %35 = vsyncadd [#allocation6], %s34
      %s36 = sshll.u32 [#allocation5], 4
      %s37 = int_to_ptr.vmem [resolvable:$true] %s36
      %42 = dma.hbm_to_vmem [thread:$0]  %s3, 3072, %s37, [#allocation6], 192, 192, 12
    $region17: #{tpu_custom_call.1} parent=1 // pred_fallthru
      _
    // Predicated region
    $region18: #{tpu_custom_call.1} parent=1 // pred_check
      _
    $region19: #{tpu_custom_call.1} parent=1 // pred_check_branch
      %44 = sbr.rel (0) target = $region21
    $region20: #{tpu_custom_call.1} parent=1 // pred_region
      _
    $region21: #{tpu_custom_call.1} parent=1 // pred_fallthru
      _
    // Predicated region
    $region22: #{tpu_custom_call.1} parent=1 // pred_check
      _
    $region23: #{tpu_custom_call.1} parent=1 // pred_check_branch
      %46 = sbr.rel (0) target = $region25
    $region24: #{tpu_custom_call.1} parent=1 // pred_region
      %s48 = ssub.s32 1024, 1024
      %49 = vsyncadd [#allocation6], %s48
      %s50 = sshll.u32 [#allocation7], 4
      %s51 = int_to_ptr.vmem [resolvable:$true] %s50
      %56 = dma.hbm_to_vmem [thread:$0]  %s5, 1024, %s51, [#allocation6], 64, 64, 4
    $region25: #{tpu_custom_call.1} parent=1 // pred_fallthru
      _
    // Predicated region
    $region26: #{tpu_custom_call.1} parent=1 // pred_check
      _
    $region27: #{tpu_custom_call.1} parent=1 // pred_check_branch
      %58 = sbr.rel (0) target = $region29
    $region28: #{tpu_custom_call.1} parent=1 // pred_region
      _
    $region29: #{tpu_custom_call.1} parent=1 // pred_fallthru
      _
    // Predicated region
    $region30: #{tpu_custom_call.1} parent=1 // pred_check
      _
    $region31: #{tpu_custom_call.1} parent=1 // pred_check_branch
      %60 = sbr.rel (0) target = $region33
    $region32: #{tpu_custom_call.1} parent=1 // pred_region
      %61 = dma.done [#allocation3], 1024
    $region33: #{tpu_custom_call.1} parent=1 // pred_fallthru
      _
    // Predicated region
    $region34: #{tpu_custom_call.1} parent=1 // pred_check
      _
    $region35: #{tpu_custom_call.1} parent=1 // pred_check_branch
      %63 = sbr.rel (0) target = $region37
    $region36: #{tpu_custom_call.1} parent=1 // pred_region
      %64 = dma.done [#allocation6], 3072
    $region37: #{tpu_custom_call.1} parent=1 // pred_fallthru
      _
    // Predicated region
    $region38: #{tpu_custom_call.1} parent=1 // pred_check
      _
    $region39: #{tpu_custom_call.1} parent=1 // pred_check_branch
      %66 = sbr.rel (0) target = $region41
    $region40: #{tpu_custom_call.1} parent=1 // pred_region
      %67 = dma.done [#allocation6], 1024
    $region41: #{tpu_custom_call.1} parent=1 // pred_fallthru
      _
    %v69 = vld [vmem:[#allocation2] sm:$0xff]
    %v70 = vld [vmem:[#allocation2 + $0x8] sm:$0xff]
    %v71 = vld [vmem:[#allocation2 + $0x10] sm:$0xff]
    %v72 = vld [vmem:[#allocation2 + $0x18] sm:$0xff]
    %v73 = vld [vmem:[#allocation2 + $0x20] sm:$0xff]
    %v74 = vld [vmem:[#allocation2 + $0x28] sm:$0xff]
    %v75 = vld [vmem:[#allocation2 + $0x30] sm:$0xff]
    %v76 = vld [vmem:[#allocation2 + $0x38] sm:$0xff]
    %77 = vadd.xlane.f32.xlu0 %v69
    %v78 = vpop.xlane.xlu0 %77
    %79 = vadd.xlane.f32.xlu0 %v70
    %v80 = vpop.xlane.xlu0 %79
    %81 = vadd.xlane.f32.xlu0 %v71
    %v82 = vpop.xlane.xlu0 %81
    %83 = vadd.xlane.f32.xlu0 %v72
    %v84 = vpop.xlane.xlu0 %83
    %85 = vadd.xlane.f32.xlu0 %v73
    %v86 = vpop.xlane.xlu0 %85
    %87 = vadd.xlane.f32.xlu0 %v74
    %v88 = vpop.xlane.xlu0 %87
    %89 = vadd.xlane.f32.xlu0 %v75
    %v90 = vpop.xlane.xlu0 %89
    %91 = vadd.xlane.f32.xlu0 %v76
    %v92 = vpop.xlane.xlu0 %91
    %v93 = vrcp.pop 128.0
    %v94 = vmul.f32 %v78, %v93
    %v95 = vmul.f32 %v80, %v93
    %v96 = vmul.f32 %v82, %v93
    %v97 = vmul.f32 %v84, %v93
    %v98 = vmul.f32 %v86, %v93
    %v99 = vmul.f32 %v88, %v93
    %v100 = vmul.f32 %v90, %v93
    %v101 = vmul.f32 %v92, %v93
    %v102 = vsub.f32 %v69, %v94
    %v103 = vsub.f32 %v70, %v95
    %v104 = vsub.f32 %v71, %v96
    %v105 = vsub.f32 %v72, %v97
    %v106 = vsub.f32 %v73, %v98
    %v107 = vsub.f32 %v74, %v99
    %v108 = vsub.f32 %v75, %v100
    %v109 = vsub.f32 %v76, %v101
    %v110 = vmul.f32 %v102, %v102
    %v111 = vmul.f32 %v103, %v103
    %v112 = vmul.f32 %v104, %v104
    %v113 = vmul.f32 %v105, %v105
    %v114 = vmul.f32 %v106, %v106
    %v115 = vmul.f32 %v107, %v107
    %v116 = vmul.f32 %v108, %v108
    %v117 = vmul.f32 %v109, %v109
    %118 = vadd.xlane.f32.xlu0 %v110
    %v119 = vpop.xlane.xlu0 %118
    %120 = vadd.xlane.f32.xlu0 %v111
    %v121 = vpop.xlane.xlu0 %120
    %122 = vadd.xlane.f32.xlu0 %v112
    %v123 = vpop.xlane.xlu0 %122
    %124 = vadd.xlane.f32.xlu0 %v113
    %v125 = vpop.xlane.xlu0 %124
    %126 = vadd.xlane.f32.xlu0 %v114
    %v127 = vpop.xlane.xlu0 %126
    %128 = vadd.xlane.f32.xlu0 %v115
    %v129 = vpop.xlane.xlu0 %128
    %130 = vadd.xlane.f32.xlu0 %v116
    %v131 = vpop.xlane.xlu0 %130
    %132 = vadd.xlane.f32.xlu0 %v117
    %v133 = vpop.xlane.xlu0 %132
    %v134 = vmul.f32 %v119, %v93
    %v135 = vmul.f32 %v121, %v93
    %v136 = vmul.f32 %v123, %v93
    %v137 = vmul.f32 %v125, %v93
    %v138 = vmul.f32 %v127, %v93
    %v139 = vmul.f32 %v129, %v93
    %v140 = vmul.f32 %v131, %v93
    %v141 = vmul.f32 %v133, %v93
    %v142 = vadd.f32 %v134, 1e-05
    %v143 = vadd.f32 %v135, 1e-05
    %v144 = vadd.f32 %v136, 1e-05
    %v145 = vadd.f32 %v137, 1e-05
    %v146 = vadd.f32 %v138, 1e-05
    %v147 = vadd.f32 %v139, 1e-05
    %v148 = vadd.f32 %v140, 1e-05
    %v149 = vadd.f32 %v141, 1e-05
    %v150 = vrsqrt.pop %v142
    %v151 = vrsqrt.pop %v143
    %v152 = vrsqrt.pop %v144
    %v153 = vrsqrt.pop %v145
    %v154 = vrsqrt.pop %v146
    %v155 = vrsqrt.pop %v147
    %v156 = vrsqrt.pop %v148
    %v157 = vrsqrt.pop %v149
    %v158 = vmul.f32 %v102, %v150
    %v159 = vmul.f32 %v103, %v151
    %v160 = vmul.f32 %v104, %v152
    %v161 = vmul.f32 %v105, %v153
    %v162 = vmul.f32 %v106, %v154
    %v163 = vmul.f32 %v107, %v155
    %v164 = vmul.f32 %v108, %v156
    %v165 = vmul.f32 %v109, %v157
    %v166 = vld [vmem:[%s1] sm:$0x1]
    %v168 = vlaneseq
    %v169 = vshrl.u32 %v168, 7
    %v170 = vsub.s32 0, %v169
    %v171 = vrot.slane %v166, %v170
    %v173 = vmul.f32 %v158, %v171
    %v174 = vmul.f32 %v159, %v171
    %v175 = vmul.f32 %v160, %v171
    %v176 = vmul.f32 %v161, %v171
    %v177 = vmul.f32 %v162, %v171
    %v178 = vmul.f32 %v163, %v171
    %v179 = vmul.f32 %v164, %v171
    %v180 = vmul.f32 %v165, %v171
    %v181 = vld [vmem:[%s2] sm:$0x1]
    %v183 = vlaneseq
    %v184 = vshrl.u32 %v183, 7
    %v185 = vsub.s32 0, %v184
    %v186 = vrot.slane %v181, %v185
    %v188 = vadd.f32 %v173, %v186
    %v189 = vadd.f32 %v174, %v186
    %v190 = vadd.f32 %v175, %v186
    %v191 = vadd.f32 %v176, %v186
    %v192 = vadd.f32 %v177, %v186
    %v193 = vadd.f32 %v178, %v186
    %v194 = vadd.f32 %v179, %v186
    %v195 = vadd.f32 %v180, %v186
    %v196 = vpack.c.bf16 %v189, %v188
    %v197 = vpack.c.bf16 %v191, %v190
    %v198 = vpack.c.bf16 %v193, %v192
    %v199 = vpack.c.bf16 %v195, %v194
    %v200 = vld [vmem:[#allocation5] sm:$0xff]
    %v201 = vld [vmem:[#allocation5 + $0x8] sm:$0xf]
    %v202 = vld [vmem:[#allocation5 + $0xc] sm:$0xff]
    %v203 = vld [vmem:[#allocation5 + $0x14] sm:$0xf]
    %v204 = vld [vmem:[#allocation5 + $0x18] sm:$0xff]
    %v205 = vld [vmem:[#allocation5 + $0x20] sm:$0xf]
    %v206 = vld [vmem:[#allocation5 + $0x24] sm:$0xff]
    %v207 = vld [vmem:[#allocation5 + $0x2c] sm:$0xf]
    %v208 = vld [vmem:[#allocation5 + $0x30] sm:$0xff]
    %v209 = vld [vmem:[#allocation5 + $0x38] sm:$0xf]
    %v210 = vld [vmem:[#allocation5 + $0x3c] sm:$0xff]
    %v211 = vld [vmem:[#allocation5 + $0x44] sm:$0xf]
    %v212 = vld [vmem:[#allocation5 + $0x48] sm:$0xff]
    %v213 = vld [vmem:[#allocation5 + $0x50] sm:$0xf]
    %v214 = vld [vmem:[#allocation5 + $0x54] sm:$0xff]
    %v215 = vld [vmem:[#allocation5 + $0x5c] sm:$0xf]
    %v216 = vld [vmem:[#allocation5 + $0x60] sm:$0xff]
    %v217 = vld [vmem:[#allocation5 + $0x68] sm:$0xf]
    %v218 = vld [vmem:[#allocation5 + $0x6c] sm:$0xff]
    %v219 = vld [vmem:[#allocation5 + $0x74] sm:$0xf]
    %v220 = vld [vmem:[#allocation5 + $0x78] sm:$0xff]
    %v221 = vld [vmem:[#allocation5 + $0x80] sm:$0xf]
    %v222 = vld [vmem:[#allocation5 + $0x84] sm:$0xff]
    %v223 = vld [vmem:[#allocation5 + $0x8c] sm:$0xf]
    %v224 = vld [vmem:[#allocation5 + $0x90] sm:$0xff]
    %v225 = vld [vmem:[#allocation5 + $0x98] sm:$0xf]
    %v226 = vld [vmem:[#allocation5 + $0x9c] sm:$0xff]
    %v227 = vld [vmem:[#allocation5 + $0xa4] sm:$0xf]
    %v228 = vld [vmem:[#allocation5 + $0xa8] sm:$0xff]
    %v229 = vld [vmem:[#allocation5 + $0xb0] sm:$0xf]
    %v230 = vld [vmem:[#allocation5 + $0xb4] sm:$0xff]
    %v231 = vld [vmem:[#allocation5 + $0xbc] sm:$0xf]
    %v232 = vld [vmem:[%s4] sm:$0x7]
    %v234 = vlaneseq
    %v235 = vshrl.u32 %v234, 7
    %v236 = vsub.s32 0, %v235
    %v237 = vrot.slane %v232, %v236
    %v238 = vlaneseq
    %v239 = vshrl.u32 %v238, 7
    %v240 = vsub.s32 1, %v239
    %v241 = vrot.slane %v232, %v240
    %v242 = vlaneseq
    %v243 = vshrl.u32 %v242, 7
    %v244 = vsub.s32 2, %v243
    %v245 = vrot.slane %v232, %v244
    %v281 = vunpack.c.l.b16 %v200
    %v282 = vunpack.c.h.b16 %v200
    %v283 = vunpack.c.l.b16 %v201
    %v284 = vunpack.c.l.b16 %v202
    %v285 = vunpack.c.h.b16 %v202
    %v286 = vunpack.c.l.b16 %v203
    %v287 = vunpack.c.l.b16 %v204
    %v288 = vunpack.c.h.b16 %v204
    %v289 = vunpack.c.l.b16 %v205
    %v290 = vunpack.c.l.b16 %v206
    %v291 = vunpack.c.h.b16 %v206
    %v292 = vunpack.c.l.b16 %v207
    %v293 = vunpack.c.l.b16 %v208
    %v294 = vunpack.c.h.b16 %v208
    %v295 = vunpack.c.l.b16 %v209
    %v296 = vunpack.c.l.b16 %v210
    %v297 = vunpack.c.h.b16 %v210
    %v298 = vunpack.c.l.b16 %v211
    %v299 = vunpack.c.l.b16 %v212
    %v300 = vunpack.c.h.b16 %v212
    %v301 = vunpack.c.l.b16 %v213
    %v302 = vunpack.c.l.b16 %v214
    %v303 = vunpack.c.h.b16 %v214
    %v304 = vunpack.c.l.b16 %v215
    %v305 = vunpack.c.l.b16 %v216
    %v306 = vunpack.c.h.b16 %v216
    %v307 = vunpack.c.l.b16 %v217
    %v308 = vunpack.c.l.b16 %v218
    %v309 = vunpack.c.h.b16 %v218
    %v310 = vunpack.c.l.b16 %v219
    %v311 = vunpack.c.l.b16 %v220
    %v312 = vunpack.c.h.b16 %v220
    %v313 = vunpack.c.l.b16 %v221
    %v314 = vunpack.c.l.b16 %v222
    %v315 = vunpack.c.h.b16 %v222
    %v316 = vunpack.c.l.b16 %v223
    %v317 = vunpack.c.l.b16 %v224
    %v318 = vunpack.c.h.b16 %v224
    %v319 = vunpack.c.l.b16 %v225
    %v320 = vunpack.c.l.b16 %v226
    %v321 = vunpack.c.h.b16 %v226
    %v322 = vunpack.c.l.b16 %v227
    %v323 = vunpack.c.l.b16 %v228
    %v324 = vunpack.c.h.b16 %v228
    %v325 = vunpack.c.l.b16 %v229
    %v326 = vunpack.c.l.b16 %v230
    %v327 = vunpack.c.h.b16 %v230
    %v328 = vunpack.c.l.b16 %v231
    %v329 = vpack.c.b16 %v284, %v281
    %v330 = vpack.c.b16 %v285, %v282
    %v331 = vpack.c.b16 %v286, %v283
    %v332 = vpack.c.b16 %v290, %v287
    %v333 = vpack.c.b16 %v291, %v288
    %v334 = vpack.c.b16 %v292, %v289
    %v335 = vpack.c.b16 %v296, %v293
    %v336 = vpack.c.b16 %v297, %v294
    %v337 = vpack.c.b16 %v298, %v295
    %v338 = vpack.c.b16 %v302, %v299
    %v339 = vpack.c.b16 %v303, %v300
    %v340 = vpack.c.b16 %v304, %v301
    %v341 = vpack.c.b16 %v308, %v305
    %v342 = vpack.c.b16 %v309, %v306
    %v343 = vpack.c.b16 %v310, %v307
    %v344 = vpack.c.b16 %v314, %v311
    %v345 = vpack.c.b16 %v315, %v312
    %v346 = vpack.c.b16 %v316, %v313
    %v347 = vpack.c.b16 %v320, %v317
    %v348 = vpack.c.b16 %v321, %v318
    %v349 = vpack.c.b16 %v322, %v319
    %v350 = vpack.c.b16 %v326, %v323
    %v351 = vpack.c.b16 %v327, %v324
    %v352 = vpack.c.b16 %v328, %v325
    %377 = vmatprep.subr.bf16.mxu0 %v351
    %378 = vmatpush1.bf16.msra.mxu0 %v350
    %379 = vmatprep.subr.bf16.mxu0 %v348
    %380 = vmatpush1.bf16.msra.mxu0 %v347
    %381 = vmatprep.subr.bf16.mxu0 %v345
    %382 = vmatpush1.bf16.msra.mxu0 %v344
    %383 = vmatprep.subr.bf16.mxu0 %v342
    %384 = vmatpush1.bf16.msra.mxu0 %v341
    %385 = vmatprep.subr.bf16.mxu0 %v339
    %386 = vmatpush1.bf16.msra.mxu0 %v338
    %387 = vmatprep.subr.bf16.mxu0 %v336
    %388 = vmatpush1.bf16.msra.mxu0 %v335
    %389 = vmatprep.subr.bf16.mxu0 %v333
    %390 = vmatpush1.bf16.msra.mxu0 %v332
    %391 = vmatprep.subr.bf16.mxu0 %v330
    %392 = vmatpush1.bf16.msra.mxu0 %v329
    %393 = vmatprep.subr.bf16.mxu0 0
    %394 = vmatpush2.bf16.msra.mxu0 0
    %395 = vmatprep.subr.bf16.mxu0 0
    %396 = vmatpush2.bf16.msra.mxu0 0
    %397 = vmatprep.subr.bf16.mxu0 0
    %398 = vmatpush2.bf16.msra.mxu0 0
    %399 = vmatprep.subr.bf16.mxu0 0
    %400 = vmatpush2.bf16.msra.mxu0 0
    %401 = vmatprep.subr.bf16.mxu0 0
    %402 = vmatpush2.bf16.msra.mxu0 0
    %403 = vmatprep.subr.bf16.mxu0 0
    %404 = vmatpush2.bf16.msra.mxu0 0
    %405 = vmatprep.subr.bf16.mxu0 0
    %406 = vmatpush2.bf16.msra.mxu0 0
    %407 = vmatprep.subr.bf16.mxu0 0
    %408 = vmatpush2.bf16.msra.mxu0 0
    %409 = vmatprep.mubr.bf16.mxu0 0
    %410 = vmatmul.mubr.bf16.gmra.mxu0 %v196
    %v411 = vpop.f32.mrf.mxu0
    %v412 = vadd.f32 %v237, %v411
    %v413 = vpop.f32.mrf.mxu0
    %v414 = vadd.f32 %v241, %v413
    %v415 = vpop.f32.mrf.mxu0
    %v416 = vadd.f32 %v237, %v415
    %v417 = vpop.f32.mrf.mxu0
    %v418 = vadd.f32 %v241, %v417
    %419 = vmatprep.mubr.bf16.mxu0 0
    %420 = vmatmul.mubr.bf16.gmra.mxu0 %v197
    %v421 = vpop.f32.mrf.mxu0
    %v422 = vadd.f32 %v237, %v421
    %v423 = vpop.f32.mrf.mxu0
    %v424 = vadd.f32 %v241, %v423
    %v425 = vpop.f32.mrf.mxu0
    %v426 = vadd.f32 %v237, %v425
    %v427 = vpop.f32.mrf.mxu0
    %v428 = vadd.f32 %v241, %v427
    %429 = vmatprep.mubr.bf16.mxu0 0
    %430 = vmatmul.mubr.bf16.gmra.mxu0 %v198
    %v431 = vpop.f32.mrf.mxu0
    %v432 = vadd.f32 %v237, %v431
    %v433 = vpop.f32.mrf.mxu0
    %v434 = vadd.f32 %v241, %v433
    %v435 = vpop.f32.mrf.mxu0
    %v436 = vadd.f32 %v237, %v435
    %v437 = vpop.f32.mrf.mxu0
    %v438 = vadd.f32 %v241, %v437
    %439 = vmatprep.mubr.bf16.mxu0 0
    %440 = vmatmul.mubr.bf16.gmra.mxu0 %v199
    %v441 = vpop.f32.mrf.mxu0
    %v442 = vadd.f32 %v237, %v441
    %v443 = vpop.f32.mrf.mxu0
    %v444 = vadd.f32 %v241, %v443
    %v445 = vpop.f32.mrf.mxu0
    %v446 = vadd.f32 %v237, %v445
    %v447 = vpop.f32.mrf.mxu0
    %v448 = vadd.f32 %v241, %v447
    %449 = vdwg.mxu0
    %450 = vmatprep.subr.bf16.mxu0 0
    %451 = vmatpush1.bf16.msra.mxu0 %v352
    %452 = vmatprep.subr.bf16.mxu0 0
    %453 = vmatpush1.bf16.msra.mxu0 %v349
    %454 = vmatprep.subr.bf16.mxu0 0
    %455 = vmatpush1.bf16.msra.mxu0 %v346
    %456 = vmatprep.subr.bf16.mxu0 0
    %457 = vmatpush1.bf16.msra.mxu0 %v343
    %458 = vmatprep.subr.bf16.mxu0 0
    %459 = vmatpush1.bf16.msra.mxu0 %v340
    %460 = vmatprep.subr.bf16.mxu0 0
    %461 = vmatpush1.bf16.msra.mxu0 %v337
    %462 = vmatprep.subr.bf16.mxu0 0
    %463 = vmatpush1.bf16.msra.mxu0 %v334
    %464 = vmatprep.subr.bf16.mxu0 0
    %465 = vmatpush1.bf16.msra.mxu0 %v331
    %466 = vmatprep.subr.bf16.mxu0 0
    %467 = vmatpush2.bf16.msra.mxu0 0
    %468 = vmatprep.subr.bf16.mxu0 0
    %469 = vmatpush2.bf16.msra.mxu0 0
    %470 = vmatprep.subr.bf16.mxu0 0
    %471 = vmatpush2.bf16.msra.mxu0 0
    %472 = vmatprep.subr.bf16.mxu0 0
    %473 = vmatpush2.bf16.msra.mxu0 0
    %474 = vmatprep.subr.bf16.mxu0 0
    %475 = vmatpush2.bf16.msra.mxu0 0
    %476 = vmatprep.subr.bf16.mxu0 0
    %477 = vmatpush2.bf16.msra.mxu0 0
    %478 = vmatprep.subr.bf16.mxu0 0
    %479 = vmatpush2.bf16.msra.mxu0 0
    %480 = vmatprep.subr.bf16.mxu0 0
    %481 = vmatpush2.bf16.msra.mxu0 0
    %482 = vmatprep.mubr.bf16.mxu0 0
    %483 = vmatmul.mubr.bf16.gmra.mxu0 %v196
    %v484 = vpop.f32.mrf.mxu0
    %v485 = vadd.f32 %v245, %v484
    %v486 = vpop.f32.mrf.mxu0
    %v487 = vpop.f32.mrf.mxu0
    %v488 = vadd.f32 %v245, %v487
    %v489 = vpop.f32.mrf.mxu0
    %490 = vmatprep.mubr.bf16.mxu0 0
    %491 = vmatmul.mubr.bf16.gmra.mxu0 %v197
    %v492 = vpop.f32.mrf.mxu0
    %v493 = vadd.f32 %v245, %v492
    %v494 = vpop.f32.mrf.mxu0
    %v495 = vpop.f32.mrf.mxu0
    %v496 = vadd.f32 %v245, %v495
    %v497 = vpop.f32.mrf.mxu0
    %498 = vmatprep.mubr.bf16.mxu0 0
    %499 = vmatmul.mubr.bf16.gmra.mxu0 %v198
    %v500 = vpop.f32.mrf.mxu0
    %v501 = vadd.f32 %v245, %v500
    %v502 = vpop.f32.mrf.mxu0
    %v503 = vpop.f32.mrf.mxu0
    %v504 = vadd.f32 %v245, %v503
    %v505 = vpop.f32.mrf.mxu0
    %506 = vmatprep.mubr.bf16.mxu0 0
    %507 = vmatmul.mubr.bf16.gmra.mxu0 %v199
    %v508 = vpop.f32.mrf.mxu0
    %v509 = vadd.f32 %v245, %v508
    %v510 = vpop.f32.mrf.mxu0
    %v511 = vpop.f32.mrf.mxu0
    %v512 = vadd.f32 %v245, %v511
    %v513 = vpop.f32.mrf.mxu0
    %514 = vdwg.mxu0
    %v515 = vpack.c.bf16 %v416, %v412
    %v516 = vpack.c.bf16 %v426, %v422
    %v517 = vpack.c.bf16 %v436, %v432
    %v518 = vpack.c.bf16 %v446, %v442
    %v519 = vpack.c.bf16 %v418, %v414
    %v520 = vpack.c.bf16 %v428, %v424
    %v521 = vpack.c.bf16 %v438, %v434
    %v522 = vpack.c.bf16 %v448, %v444
    %v523 = vpack.c.bf16 %v488, %v485
    %v524 = vpack.c.bf16 %v496, %v493
    %v525 = vpack.c.bf16 %v504, %v501
    %v526 = vpack.c.bf16 %v512, %v509
    %vm527 = vcmask 261120
    %v529 = vsel %vm527, %v515, 0
    %v532 = vsel %vm527, %v519, 0
    %534 = vmatprep.subr.bf16.mxu0 0
    %535 = vmatpush1.bf16.xpose.msra.mxu0 0
    %536 = vmatprep.subr.bf16.mxu0 0
    %537 = vmatpush1.bf16.xpose.msra.mxu0 0
    %538 = vmatprep.subr.bf16.mxu0 0
    %539 = vmatpush1.bf16.xpose.msra.mxu0 0
    %540 = vmatprep.subr.bf16.mxu0 0
    %541 = vmatpush1.bf16.xpose.msra.mxu0 0
    %542 = vmatprep.subr.bf16.mxu0 0
    %543 = vmatpush1.bf16.xpose.msra.mxu0 0
    %544 = vmatprep.subr.bf16.mxu0 0
    %545 = vmatpush1.bf16.xpose.msra.mxu0 0
    %546 = vmatprep.subr.bf16.mxu0 0
    %547 = vmatpush1.bf16.xpose.msra.mxu0 0
    %548 = vmatprep.subr.bf16.mxu0 0
    %549 = vmatpush1.bf16.xpose.msra.mxu0 %v532
    %550 = vmatprep.subr.bf16.mxu0 0
    %551 = vmatpush2.bf16.xpose.msra.mxu0 0
    %552 = vmatprep.subr.bf16.mxu0 0
    %553 = vmatpush2.bf16.xpose.msra.mxu0 0
    %554 = vmatprep.subr.bf16.mxu0 0
    %555 = vmatpush2.bf16.xpose.msra.mxu0 0
    %556 = vmatprep.subr.bf16.mxu0 0
    %557 = vmatpush2.bf16.xpose.msra.mxu0 0
    %558 = vmatprep.subr.bf16.mxu0 0
    %559 = vmatpush2.bf16.xpose.msra.mxu0 0
    %560 = vmatprep.subr.bf16.mxu0 0
    %561 = vmatpush2.bf16.xpose.msra.mxu0 0
    %562 = vmatprep.subr.bf16.mxu0 0
    %563 = vmatpush2.bf16.xpose.msra.mxu0 0
    %564 = vmatprep.subr.bf16.mxu0 0
    %565 = vmatpush2.bf16.xpose.msra.mxu0 0
    %566 = vmatprep.mubr.bf16.mxu0 0
    %567 = vmatmul.mubr.bf16.gmra.mxu0 %v529
    %v568 = vpop.f32.mrf.mxu0
    %v569 = vadd.f32 0.0, %v568
    %v570 = vpop.f32.mrf.mxu0
    %v571 = vpop.f32.mrf.mxu0
    %v572 = vadd.f32 0.0, %v571
    %v573 = vpop.f32.mrf.mxu0
    %574 = vdwg.mxu0
    %v576 = vsel %vm527, %v516, 0
    %v579 = vsel %vm527, %v520, 0
    %581 = vmatprep.subr.bf16.mxu0 0
    %582 = vmatpush1.bf16.xpose.msra.mxu0 0
    %583 = vmatprep.subr.bf16.mxu0 0
    %584 = vmatpush1.bf16.xpose.msra.mxu0 0
    %585 = vmatprep.subr.bf16.mxu0 0
    %586 = vmatpush1.bf16.xpose.msra.mxu0 0
    %587 = vmatprep.subr.bf16.mxu0 0
    %588 = vmatpush1.bf16.xpose.msra.mxu0 0
    %589 = vmatprep.subr.bf16.mxu0 0
    %590 = vmatpush1.bf16.xpose.msra.mxu0 0
    %591 = vmatprep.subr.bf16.mxu0 0
    %592 = vmatpush1.bf16.xpose.msra.mxu0 0
    %593 = vmatprep.subr.bf16.mxu0 0
    %594 = vmatpush1.bf16.xpose.msra.mxu0 0
    %595 = vmatprep.subr.bf16.mxu0 0
    %596 = vmatpush1.bf16.xpose.msra.mxu0 %v579
    %597 = vmatprep.subr.bf16.mxu0 0
    %598 = vmatpush2.bf16.xpose.msra.mxu0 0
    %599 = vmatprep.subr.bf16.mxu0 0
    %600 = vmatpush2.bf16.xpose.msra.mxu0 0
    %601 = vmatprep.subr.bf16.mxu0 0
    %602 = vmatpush2.bf16.xpose.msra.mxu0 0
    %603 = vmatprep.subr.bf16.mxu0 0
    %604 = vmatpush2.bf16.xpose.msra.mxu0 0
    %605 = vmatprep.subr.bf16.mxu0 0
    %606 = vmatpush2.bf16.xpose.msra.mxu0 0
    %607 = vmatprep.subr.bf16.mxu0 0
    %608 = vmatpush2.bf16.xpose.msra.mxu0 0
    %609 = vmatprep.subr.bf16.mxu0 0
    %610 = vmatpush2.bf16.xpose.msra.mxu0 0
    %611 = vmatprep.subr.bf16.mxu0 0
    %612 = vmatpush2.bf16.xpose.msra.mxu0 0
    %613 = vmatprep.mubr.bf16.mxu0 0
    %614 = vmatmul.mubr.bf16.gmra.mxu0 %v576
    %v615 = vpop.f32.mrf.mxu0
    %v616 = vadd.f32 0.0, %v615
    %v617 = vpop.f32.mrf.mxu0
    %v618 = vpop.f32.mrf.mxu0
    %v619 = vadd.f32 0.0, %v618
    %v620 = vpop.f32.mrf.mxu0
    %621 = vdwg.mxu0
    %v623 = vsel %vm527, %v517, 0
    %v626 = vsel %vm527, %v521, 0
    %628 = vmatprep.subr.bf16.mxu0 0
    %629 = vmatpush1.bf16.xpose.msra.mxu0 0
    %630 = vmatprep.subr.bf16.mxu0 0
    %631 = vmatpush1.bf16.xpose.msra.mxu0 0
    %632 = vmatprep.subr.bf16.mxu0 0
    %633 = vmatpush1.bf16.xpose.msra.mxu0 0
    %634 = vmatprep.subr.bf16.mxu0 0
    %635 = vmatpush1.bf16.xpose.msra.mxu0 0
    %636 = vmatprep.subr.bf16.mxu0 0
    %637 = vmatpush1.bf16.xpose.msra.mxu0 0
    %638 = vmatprep.subr.bf16.mxu0 0
    %639 = vmatpush1.bf16.xpose.msra.mxu0 0
    %640 = vmatprep.subr.bf16.mxu0 0
    %641 = vmatpush1.bf16.xpose.msra.mxu0 0
    %642 = vmatprep.subr.bf16.mxu0 0
    %643 = vmatpush1.bf16.xpose.msra.mxu0 %v626
    %644 = vmatprep.subr.bf16.mxu0 0
    %645 = vmatpush2.bf16.xpose.msra.mxu0 0
    %646 = vmatprep.subr.bf16.mxu0 0
    %647 = vmatpush2.bf16.xpose.msra.mxu0 0
    %648 = vmatprep.subr.bf16.mxu0 0
    %649 = vmatpush2.bf16.xpose.msra.mxu0 0
    %650 = vmatprep.subr.bf16.mxu0 0
    %651 = vmatpush2.bf16.xpose.msra.mxu0 0
    %652 = vmatprep.subr.bf16.mxu0 0
    %653 = vmatpush2.bf16.xpose.msra.mxu0 0
    %654 = vmatprep.subr.bf16.mxu0 0
    %655 = vmatpush2.bf16.xpose.msra.mxu0 0
    %656 = vmatprep.subr.bf16.mxu0 0
    %657 = vmatpush2.bf16.xpose.msra.mxu0 0
    %658 = vmatprep.subr.bf16.mxu0 0
    %659 = vmatpush2.bf16.xpose.msra.mxu0 0
    %660 = vmatprep.mubr.bf16.mxu0 0
    %661 = vmatmul.mubr.bf16.gmra.mxu0 %v623
    %v662 = vpop.f32.mrf.mxu0
    %v663 = vadd.f32 0.0, %v662
    %v664 = vpop.f32.mrf.mxu0
    %v665 = vpop.f32.mrf.mxu0
    %v666 = vadd.f32 0.0, %v665
    %v667 = vpop.f32.mrf.mxu0
    %668 = vdwg.mxu0
    %v670 = vsel %vm527, %v518, 0
    %v673 = vsel %vm527, %v522, 0
    %675 = vmatprep.subr.bf16.mxu0 0
    %676 = vmatpush1.bf16.xpose.msra.mxu0 0
    %677 = vmatprep.subr.bf16.mxu0 0
    %678 = vmatpush1.bf16.xpose.msra.mxu0 0
    %679 = vmatprep.subr.bf16.mxu0 0
    %680 = vmatpush1.bf16.xpose.msra.mxu0 0
    %681 = vmatprep.subr.bf16.mxu0 0
    %682 = vmatpush1.bf16.xpose.msra.mxu0 0
    %683 = vmatprep.subr.bf16.mxu0 0
    %684 = vmatpush1.bf16.xpose.msra.mxu0 0
    %685 = vmatprep.subr.bf16.mxu0 0
    %686 = vmatpush1.bf16.xpose.msra.mxu0 0
    %687 = vmatprep.subr.bf16.mxu0 0
    %688 = vmatpush1.bf16.xpose.msra.mxu0 0
    %689 = vmatprep.subr.bf16.mxu0 0
    %690 = vmatpush1.bf16.xpose.msra.mxu0 %v673
    %691 = vmatprep.subr.bf16.mxu0 0
    %692 = vmatpush2.bf16.xpose.msra.mxu0 0
    %693 = vmatprep.subr.bf16.mxu0 0
    %694 = vmatpush2.bf16.xpose.msra.mxu0 0
    %695 = vmatprep.subr.bf16.mxu0 0
    %696 = vmatpush2.bf16.xpose.msra.mxu0 0
    %697 = vmatprep.subr.bf16.mxu0 0
    %698 = vmatpush2.bf16.xpose.msra.mxu0 0
    %699 = vmatprep.subr.bf16.mxu0 0
    %700 = vmatpush2.bf16.xpose.msra.mxu0 0
    %701 = vmatprep.subr.bf16.mxu0 0
    %702 = vmatpush2.bf16.xpose.msra.mxu0 0
    %703 = vmatprep.subr.bf16.mxu0 0
    %704 = vmatpush2.bf16.xpose.msra.mxu0 0
    %705 = vmatprep.subr.bf16.mxu0 0
    %706 = vmatpush2.bf16.xpose.msra.mxu0 0
    %707 = vmatprep.mubr.bf16.mxu0 0
    %708 = vmatmul.mubr.bf16.gmra.mxu0 %v670
    %v709 = vpop.f32.mrf.mxu0
    %v710 = vadd.f32 0.0, %v709
    %v711 = vpop.f32.mrf.mxu0
    %v712 = vpop.f32.mrf.mxu0
    %v713 = vadd.f32 0.0, %v712
    %v714 = vpop.f32.mrf.mxu0
    %715 = vdwg.mxu0
    %vm716 = vcmask 130048
    %v717 = vsel %vm716, %v569, -inf
    %718 = vmax.xlane.f32.xlu0 %v717
    %v719 = vpop.xlane.xlu0 %718
    %v720 = vsel %vm716, %v572, -inf
    %721 = vmax.xlane.f32.xlu0 %v720
    %v722 = vpop.xlane.xlu0 %721
    %v723 = vsel %vm716, %v616, -inf
    %724 = vmax.xlane.f32.xlu0 %v723
    %v725 = vpop.xlane.xlu0 %724
    %v726 = vsel %vm716, %v619, -inf
    %727 = vmax.xlane.f32.xlu0 %v726
    %v728 = vpop.xlane.xlu0 %727
    %v729 = vsel %vm716, %v663, -inf
    %730 = vmax.xlane.f32.xlu0 %v729
    %v731 = vpop.xlane.xlu0 %730
    %v732 = vsel %vm716, %v666, -inf
    %733 = vmax.xlane.f32.xlu0 %v732
    %v734 = vpop.xlane.xlu0 %733
    %v735 = vsel %vm716, %v710, -inf
    %736 = vmax.xlane.f32.xlu0 %v735
    %v737 = vpop.xlane.xlu0 %736
    %v738 = vsel %vm716, %v713, -inf
    %739 = vmax.xlane.f32.xlu0 %v738
    %v740 = vpop.xlane.xlu0 %739
    %v741 = vsub.f32 %v569, %v719
    %v742 = vsub.f32 %v572, %v722
    %v743 = vsub.f32 %v616, %v725
    %v744 = vsub.f32 %v619, %v728
    %v745 = vsub.f32 %v663, %v731
    %v746 = vsub.f32 %v666, %v734
    %v747 = vsub.f32 %v710, %v737
    %v748 = vsub.f32 %v713, %v740
    %v749 = vmul.f32 %v741, 1.442695
    %v750 = vpow.pop %v749
    %v751 = vmul.f32 %v742, 1.442695
    %v752 = vpow.pop %v751
    %v753 = vmul.f32 %v743, 1.442695
    %v754 = vpow.pop %v753
    %v755 = vmul.f32 %v744, 1.442695
    %v756 = vpow.pop %v755
    %v757 = vmul.f32 %v745, 1.442695
    %v758 = vpow.pop %v757
    %v759 = vmul.f32 %v746, 1.442695
    %v760 = vpow.pop %v759
    %v761 = vmul.f32 %v747, 1.442695
    %v762 = vpow.pop %v761
    %v763 = vmul.f32 %v748, 1.442695
    %v764 = vpow.pop %v763
    %v765 = vsel %vm716, %v750, 0.0
    %766 = vadd.xlane.f32.xlu0 %v765
    %v767 = vpop.xlane.xlu0 %766
    %v768 = vsel %vm716, %v752, 0.0
    %769 = vadd.xlane.f32.xlu0 %v768
    %v770 = vpop.xlane.xlu0 %769
    %v771 = vsel %vm716, %v754, 0.0
    %772 = vadd.xlane.f32.xlu0 %v771
    %v773 = vpop.xlane.xlu0 %772
    %v774 = vsel %vm716, %v756, 0.0
    %775 = vadd.xlane.f32.xlu0 %v774
    %v776 = vpop.xlane.xlu0 %775
    %v777 = vsel %vm716, %v758, 0.0
    %778 = vadd.xlane.f32.xlu0 %v777
    %v779 = vpop.xlane.xlu0 %778
    %v780 = vsel %vm716, %v760, 0.0
    %781 = vadd.xlane.f32.xlu0 %v780
    %v782 = vpop.xlane.xlu0 %781
    %v783 = vsel %vm716, %v762, 0.0
    %784 = vadd.xlane.f32.xlu0 %v783
    %v785 = vpop.xlane.xlu0 %784
    %v786 = vsel %vm716, %v764, 0.0
    %787 = vadd.xlane.f32.xlu0 %v786
    %v788 = vpop.xlane.xlu0 %787
    %v789 = vrcp.pop %v767
    %v790 = vrcp.pop %v770
    %v791 = vrcp.pop %v773
    %v792 = vrcp.pop %v776
    %v793 = vrcp.pop %v779
    %v794 = vrcp.pop %v782
    %v795 = vrcp.pop %v785
    %v796 = vrcp.pop %v788
    %v797 = vmul.f32 %v750, %v789
    %v798 = vmul.f32 %v752, %v790
    %v799 = vmul.f32 %v754, %v791
    %v800 = vmul.f32 %v756, %v792
    %v801 = vmul.f32 %v758, %v793
    %v802 = vmul.f32 %v760, %v794
    %v803 = vmul.f32 %v762, %v795
    %v804 = vmul.f32 %v764, %v796
    %v805 = vpack.c.bf16 %v798, %v797
    %v806 = vpack.c.bf16 %v800, %v799
    %v807 = vpack.c.bf16 %v802, %v801
    %v808 = vpack.c.bf16 %v804, %v803
    %v810 = vsel %vm716, %v805, 0
    %812 = vmatprep.subr.bf16.mxu0 0
    %813 = vmatpush1.bf16.msra.mxu0 0
    %814 = vmatprep.subr.bf16.mxu0 0
    %815 = vmatpush1.bf16.msra.mxu0 0
    %816 = vmatprep.subr.bf16.mxu0 0
    %817 = vmatpush1.bf16.msra.mxu0 0
    %818 = vmatprep.subr.bf16.mxu0 0
    %819 = vmatpush1.bf16.msra.mxu0 0
    %820 = vmatprep.subr.bf16.mxu0 0
    %821 = vmatpush1.bf16.msra.mxu0 0
    %822 = vmatprep.subr.bf16.mxu0 0
    %823 = vmatpush1.bf16.msra.mxu0 0
    %824 = vmatprep.subr.bf16.mxu0 0
    %825 = vmatpush1.bf16.msra.mxu0 0
    %826 = vmatprep.subr.bf16.mxu0 0
    %827 = vmatpush1.bf16.msra.mxu0 %v523
    %828 = vmatprep.subr.bf16.mxu0 0
    %829 = vmatpush2.bf16.msra.mxu0 0
    %830 = vmatprep.subr.bf16.mxu0 0
    %831 = vmatpush2.bf16.msra.mxu0 0
    %832 = vmatprep.subr.bf16.mxu0 0
    %833 = vmatpush2.bf16.msra.mxu0 0
    %834 = vmatprep.subr.bf16.mxu0 0
    %835 = vmatpush2.bf16.msra.mxu0 0
    %836 = vmatprep.subr.bf16.mxu0 0
    %837 = vmatpush2.bf16.msra.mxu0 0
    %838 = vmatprep.subr.bf16.mxu0 0
    %839 = vmatpush2.bf16.msra.mxu0 0
    %840 = vmatprep.subr.bf16.mxu0 0
    %841 = vmatpush2.bf16.msra.mxu0 0
    %842 = vmatprep.subr.bf16.mxu0 0
    %843 = vmatpush2.bf16.msra.mxu0 0
    %844 = vmatprep.mubr.bf16.mxu0 0
    %845 = vmatmul.mubr.bf16.gmra.mxu0 %v810
    %v846 = vpop.f32.mrf.mxu0
    %v847 = vadd.f32 0.0, %v846
    %v848 = vpop.f32.mrf.mxu0
    %v849 = vpop.f32.mrf.mxu0
    %v850 = vadd.f32 0.0, %v849
    %v851 = vpop.f32.mrf.mxu0
    %852 = vdwg.mxu0
    %v854 = vsel %vm716, %v806, 0
    %856 = vmatprep.subr.bf16.mxu0 0
    %857 = vmatpush1.bf16.msra.mxu0 0
    %858 = vmatprep.subr.bf16.mxu0 0
    %859 = vmatpush1.bf16.msra.mxu0 0
    %860 = vmatprep.subr.bf16.mxu0 0
    %861 = vmatpush1.bf16.msra.mxu0 0
    %862 = vmatprep.subr.bf16.mxu0 0
    %863 = vmatpush1.bf16.msra.mxu0 0
    %864 = vmatprep.subr.bf16.mxu0 0
    %865 = vmatpush1.bf16.msra.mxu0 0
    %866 = vmatprep.subr.bf16.mxu0 0
    %867 = vmatpush1.bf16.msra.mxu0 0
    %868 = vmatprep.subr.bf16.mxu0 0
    %869 = vmatpush1.bf16.msra.mxu0 0
    %870 = vmatprep.subr.bf16.mxu0 0
    %871 = vmatpush1.bf16.msra.mxu0 %v524
    %872 = vmatprep.subr.bf16.mxu0 0
    %873 = vmatpush2.bf16.msra.mxu0 0
    %874 = vmatprep.subr.bf16.mxu0 0
    %875 = vmatpush2.bf16.msra.mxu0 0
    %876 = vmatprep.subr.bf16.mxu0 0
    %877 = vmatpush2.bf16.msra.mxu0 0
    %878 = vmatprep.subr.bf16.mxu0 0
    %879 = vmatpush2.bf16.msra.mxu0 0
    %880 = vmatprep.subr.bf16.mxu0 0
    %881 = vmatpush2.bf16.msra.mxu0 0
    %882 = vmatprep.subr.bf16.mxu0 0
    %883 = vmatpush2.bf16.msra.mxu0 0
    %884 = vmatprep.subr.bf16.mxu0 0
    %885 = vmatpush2.bf16.msra.mxu0 0
    %886 = vmatprep.subr.bf16.mxu0 0
    %887 = vmatpush2.bf16.msra.mxu0 0
    %888 = vmatprep.mubr.bf16.mxu0 0
    %889 = vmatmul.mubr.bf16.gmra.mxu0 %v854
    %v890 = vpop.f32.mrf.mxu0
    %v891 = vadd.f32 0.0, %v890
    %v892 = vpop.f32.mrf.mxu0
    %v893 = vpop.f32.mrf.mxu0
    %v894 = vadd.f32 0.0, %v893
    %v895 = vpop.f32.mrf.mxu0
    %896 = vdwg.mxu0
    %v898 = vsel %vm716, %v807, 0
    %900 = vmatprep.subr.bf16.mxu0 0
    %901 = vmatpush1.bf16.msra.mxu0 0
    %902 = vmatprep.subr.bf16.mxu0 0
    %903 = vmatpush1.bf16.msra.mxu0 0
    %904 = vmatprep.subr.bf16.mxu0 0
    %905 = vmatpush1.bf16.msra.mxu0 0
    %906 = vmatprep.subr.bf16.mxu0 0
    %907 = vmatpush1.bf16.msra.mxu0 0
    %908 = vmatprep.subr.bf16.mxu0 0
    %909 = vmatpush1.bf16.msra.mxu0 0
    %910 = vmatprep.subr.bf16.mxu0 0
    %911 = vmatpush1.bf16.msra.mxu0 0
    %912 = vmatprep.subr.bf16.mxu0 0
    %913 = vmatpush1.bf16.msra.mxu0 0
    %914 = vmatprep.subr.bf16.mxu0 0
    %915 = vmatpush1.bf16.msra.mxu0 %v525
    %916 = vmatprep.subr.bf16.mxu0 0
    %917 = vmatpush2.bf16.msra.mxu0 0
    %918 = vmatprep.subr.bf16.mxu0 0
    %919 = vmatpush2.bf16.msra.mxu0 0
    %920 = vmatprep.subr.bf16.mxu0 0
    %921 = vmatpush2.bf16.msra.mxu0 0
    %922 = vmatprep.subr.bf16.mxu0 0
    %923 = vmatpush2.bf16.msra.mxu0 0
    %924 = vmatprep.subr.bf16.mxu0 0
    %925 = vmatpush2.bf16.msra.mxu0 0
    %926 = vmatprep.subr.bf16.mxu0 0
    %927 = vmatpush2.bf16.msra.mxu0 0
    %928 = vmatprep.subr.bf16.mxu0 0
    %929 = vmatpush2.bf16.msra.mxu0 0
    %930 = vmatprep.subr.bf16.mxu0 0
    %931 = vmatpush2.bf16.msra.mxu0 0
    %932 = vmatprep.mubr.bf16.mxu0 0
    %933 = vmatmul.mubr.bf16.gmra.mxu0 %v898
    %v934 = vpop.f32.mrf.mxu0
    %v935 = vadd.f32 0.0, %v934
    %v936 = vpop.f32.mrf.mxu0
    %v937 = vpop.f32.mrf.mxu0
    %v938 = vadd.f32 0.0, %v937
    %v939 = vpop.f32.mrf.mxu0
    %940 = vdwg.mxu0
    %v942 = vsel %vm716, %v808, 0
    %944 = vmatprep.subr.bf16.mxu0 0
    %945 = vmatpush1.bf16.msra.mxu0 0
    %946 = vmatprep.subr.bf16.mxu0 0
    %947 = vmatpush1.bf16.msra.mxu0 0
    %948 = vmatprep.subr.bf16.mxu0 0
    %949 = vmatpush1.bf16.msra.mxu0 0
    %950 = vmatprep.subr.bf16.mxu0 0
    %951 = vmatpush1.bf16.msra.mxu0 0
    %952 = vmatprep.subr.bf16.mxu0 0
    %953 = vmatpush1.bf16.msra.mxu0 0
    %954 = vmatprep.subr.bf16.mxu0 0
    %955 = vmatpush1.bf16.msra.mxu0 0
    %956 = vmatprep.subr.bf16.mxu0 0
    %957 = vmatpush1.bf16.msra.mxu0 0
    %958 = vmatprep.subr.bf16.mxu0 0
    %959 = vmatpush1.bf16.msra.mxu0 %v526
    %960 = vmatprep.subr.bf16.mxu0 0
    %961 = vmatpush2.bf16.msra.mxu0 0
    %962 = vmatprep.subr.bf16.mxu0 0
    %963 = vmatpush2.bf16.msra.mxu0 0
    %964 = vmatprep.subr.bf16.mxu0 0
    %965 = vmatpush2.bf16.msra.mxu0 0
    %966 = vmatprep.subr.bf16.mxu0 0
    %967 = vmatpush2.bf16.msra.mxu0 0
    %968 = vmatprep.subr.bf16.mxu0 0
    %969 = vmatpush2.bf16.msra.mxu0 0
    %970 = vmatprep.subr.bf16.mxu0 0
    %971 = vmatpush2.bf16.msra.mxu0 0
    %972 = vmatprep.subr.bf16.mxu0 0
    %973 = vmatpush2.bf16.msra.mxu0 0
    %974 = vmatprep.subr.bf16.mxu0 0
    %975 = vmatpush2.bf16.msra.mxu0 0
    %976 = vmatprep.mubr.bf16.mxu0 0
    %977 = vmatmul.mubr.bf16.gmra.mxu0 %v942
    %v978 = vpop.f32.mrf.mxu0
    %v979 = vadd.f32 0.0, %v978
    %v980 = vpop.f32.mrf.mxu0
    %v981 = vpop.f32.mrf.mxu0
    %v982 = vadd.f32 0.0, %v981
    %v983 = vpop.f32.mrf.mxu0
    %984 = vdwg.mxu0
    %986 = vrot.lane.b32.xlu0 %v515, 96
    %v987 = vpop.permute.xlu0 %986
    %989 = vrot.lane.b32.xlu0 %v519, 96
    %v990 = vpop.permute.xlu0 %989
    %v992 = vsel %vm527, %v987, 0
    %v995 = vsel %vm527, %v990, 0
    %997 = vmatprep.subr.bf16.mxu0 0
    %998 = vmatpush1.bf16.xpose.msra.mxu0 0
    %999 = vmatprep.subr.bf16.mxu0 0
    %1000 = vmatpush1.bf16.xpose.msra.mxu0 0
    %1001 = vmatprep.subr.bf16.mxu0 0
    %1002 = vmatpush1.bf16.xpose.msra.mxu0 0
    %1003 = vmatprep.subr.bf16.mxu0 0
    %1004 = vmatpush1.bf16.xpose.msra.mxu0 0
    %1005 = vmatprep.subr.bf16.mxu0 0
    %1006 = vmatpush1.bf16.xpose.msra.mxu0 0
    %1007 = vmatprep.subr.bf16.mxu0 0
    %1008 = vmatpush1.bf16.xpose.msra.mxu0 0
    %1009 = vmatprep.subr.bf16.mxu0 0
    %1010 = vmatpush1.bf16.xpose.msra.mxu0 0
    %1011 = vmatprep.subr.bf16.mxu0 0
    %1012 = vmatpush1.bf16.xpose.msra.mxu0 %v995
    %1013 = vmatprep.subr.bf16.mxu0 0
    %1014 = vmatpush2.bf16.xpose.msra.mxu0 0
    %1015 = vmatprep.subr.bf16.mxu0 0
    %1016 = vmatpush2.bf16.xpose.msra.mxu0 0
    %1017 = vmatprep.subr.bf16.mxu0 0
    %1018 = vmatpush2.bf16.xpose.msra.mxu0 0
    %1019 = vmatprep.subr.bf16.mxu0 0
    %1020 = vmatpush2.bf16.xpose.msra.mxu0 0
    %1021 = vmatprep.subr.bf16.mxu0 0
    %1022 = vmatpush2.bf16.xpose.msra.mxu0 0
    %1023 = vmatprep.subr.bf16.mxu0 0
    %1024 = vmatpush2.bf16.xpose.msra.mxu0 0
    %1025 = vmatprep.subr.bf16.mxu0 0
    %1026 = vmatpush2.bf16.xpose.msra.mxu0 0
    %1027 = vmatprep.subr.bf16.mxu0 0
    %1028 = vmatpush2.bf16.xpose.msra.mxu0 0
    %1029 = vmatprep.mubr.bf16.mxu0 0
    %1030 = vmatmul.mubr.bf16.gmra.mxu0 %v992
    %v1031 = vpop.f32.mrf.mxu0
    %v1032 = vadd.f32 0.0, %v1031
    %v1033 = vpop.f32.mrf.mxu0
    %v1034 = vpop.f32.mrf.mxu0
    %v1035 = vadd.f32 0.0, %v1034
    %v1036 = vpop.f32.mrf.mxu0
    %1037 = vdwg.mxu0
    %1039 = vrot.lane.b32.xlu0 %v516, 96
    %v1040 = vpop.permute.xlu0 %1039
    %1042 = vrot.lane.b32.xlu0 %v520, 96
    %v1043 = vpop.permute.xlu0 %1042
    %v1045 = vsel %vm527, %v1040, 0
    %v1048 = vsel %vm527, %v1043, 0
    %1050 = vmatprep.subr.bf16.mxu0 0
    %1051 = vmatpush1.bf16.xpose.msra.mxu0 0
    %1052 = vmatprep.subr.bf16.mxu0 0
    %1053 = vmatpush1.bf16.xpose.msra.mxu0 0
    %1054 = vmatprep.subr.bf16.mxu0 0
    %1055 = vmatpush1.bf16.xpose.msra.mxu0 0
    %1056 = vmatprep.subr.bf16.mxu0 0
    %1057 = vmatpush1.bf16.xpose.msra.mxu0 0
    %1058 = vmatprep.subr.bf16.mxu0 0
    %1059 = vmatpush1.bf16.xpose.msra.mxu0 0
    %1060 = vmatprep.subr.bf16.mxu0 0
    %1061 = vmatpush1.bf16.xpose.msra.mxu0 0
    %1062 = vmatprep.subr.bf16.mxu0 0
    %1063 = vmatpush1.bf16.xpose.msra.mxu0 0
    %1064 = vmatprep.subr.bf16.mxu0 0
    %1065 = vmatpush1.bf16.xpose.msra.mxu0 %v1048
    %1066 = vmatprep.subr.bf16.mxu0 0
    %1067 = vmatpush2.bf16.xpose.msra.mxu0 0
    %1068 = vmatprep.subr.bf16.mxu0 0
    %1069 = vmatpush2.bf16.xpose.msra.mxu0 0
    %1070 = vmatprep.subr.bf16.mxu0 0
    %1071 = vmatpush2.bf16.xpose.msra.mxu0 0
    %1072 = vmatprep.subr.bf16.mxu0 0
    %1073 = vmatpush2.bf16.xpose.msra.mxu0 0
    %1074 = vmatprep.subr.bf16.mxu0 0
    %1075 = vmatpush2.bf16.xpose.msra.mxu0 0
    %1076 = vmatprep.subr.bf16.mxu0 0
    %1077 = vmatpush2.bf16.xpose.msra.mxu0 0
    %1078 = vmatprep.subr.bf16.mxu0 0
    %1079 = vmatpush2.bf16.xpose.msra.mxu0 0
    %1080 = vmatprep.subr.bf16.mxu0 0
    %1081 = vmatpush2.bf16.xpose.msra.mxu0 0
    %1082 = vmatprep.mubr.bf16.mxu0 0
    %1083 = vmatmul.mubr.bf16.gmra.mxu0 %v1045
    %v1084 = vpop.f32.mrf.mxu0
    %v1085 = vadd.f32 0.0, %v1084
    %v1086 = vpop.f32.mrf.mxu0
    %v1087 = vpop.f32.mrf.mxu0
    %v1088 = vadd.f32 0.0, %v1087
    %v1089 = vpop.f32.mrf.mxu0
    %1090 = vdwg.mxu0
    %1092 = vrot.lane.b32.xlu0 %v517, 96
    %v1093 = vpop.permute.xlu0 %1092
    %1095 = vrot.lane.b32.xlu0 %v521, 96
    %v1096 = vpop.permute.xlu0 %1095
    %v1098 = vsel %vm527, %v1093, 0
    %v1101 = vsel %vm527, %v1096, 0
    %1103 = vmatprep.subr.bf16.mxu0 0
    %1104 = vmatpush1.bf16.xpose.msra.mxu0 0
    %1105 = vmatprep.subr.bf16.mxu0 0
    %1106 = vmatpush1.bf16.xpose.msra.mxu0 0
    %1107 = vmatprep.subr.bf16.mxu0 0
    %1108 = vmatpush1.bf16.xpose.msra.mxu0 0
    %1109 = vmatprep.subr.bf16.mxu0 0
    %1110 = vmatpush1.bf16.xpose.msra.mxu0 0
    %1111 = vmatprep.subr.bf16.mxu0 0
    %1112 = vmatpush1.bf16.xpose.msra.mxu0 0
    %1113 = vmatprep.subr.bf16.mxu0 0
    %1114 = vmatpush1.bf16.xpose.msra.mxu0 0
    %1115 = vmatprep.subr.bf16.mxu0 0
    %1116 = vmatpush1.bf16.xpose.msra.mxu0 0
    %1117 = vmatprep.subr.bf16.mxu0 0
    %1118 = vmatpush1.bf16.xpose.msra.mxu0 %v1101
    %1119 = vmatprep.subr.bf16.mxu0 0
    %1120 = vmatpush2.bf16.xpose.msra.mxu0 0
    %1121 = vmatprep.subr.bf16.mxu0 0
    %1122 = vmatpush2.bf16.xpose.msra.mxu0 0
    %1123 = vmatprep.subr.bf16.mxu0 0
    %1124 = vmatpush2.bf16.xpose.msra.mxu0 0
    %1125 = vmatprep.subr.bf16.mxu0 0
    %1126 = vmatpush2.bf16.xpose.msra.mxu0 0
    %1127 = vmatprep.subr.bf16.mxu0 0
    %1128 = vmatpush2.bf16.xpose.msra.mxu0 0
    %1129 = vmatprep.subr.bf16.mxu0 0
    %1130 = vmatpush2.bf16.xpose.msra.mxu0 0
    %1131 = vmatprep.subr.bf16.mxu0 0
    %1132 = vmatpush2.bf16.xpose.msra.mxu0 0
    %1133 = vmatprep.subr.bf16.mxu0 0
    %1134 = vmatpush2.bf16.xpose.msra.mxu0 0
    %1135 = vmatprep.mubr.bf16.mxu0 0
    %1136 = vmatmul.mubr.bf16.gmra.mxu0 %v1098
    %v1137 = vpop.f32.mrf.mxu0
    %v1138 = vadd.f32 0.0, %v1137
    %v1139 = vpop.f32.mrf.mxu0
    %v1140 = vpop.f32.mrf.mxu0
    %v1141 = vadd.f32 0.0, %v1140
    %v1142 = vpop.f32.mrf.mxu0
    %1143 = vdwg.mxu0
    %1145 = vrot.lane.b32.xlu0 %v518, 96
    %v1146 = vpop.permute.xlu0 %1145
    %1148 = vrot.lane.b32.xlu0 %v522, 96
    %v1149 = vpop.permute.xlu0 %1148
    %v1151 = vsel %vm527, %v1146, 0
    %v1154 = vsel %vm527, %v1149, 0
    %1156 = vmatprep.subr.bf16.mxu0 0
    %1157 = vmatpush1.bf16.xpose.msra.mxu0 0
    %1158 = vmatprep.subr.bf16.mxu0 0
    %1159 = vmatpush1.bf16.xpose.msra.mxu0 0
    %1160 = vmatprep.subr.bf16.mxu0 0
    %1161 = vmatpush1.bf16.xpose.msra.mxu0 0
    %1162 = vmatprep.subr.bf16.mxu0 0
    %1163 = vmatpush1.bf16.xpose.msra.mxu0 0
    %1164 = vmatprep.subr.bf16.mxu0 0
    %1165 = vmatpush1.bf16.xpose.msra.mxu0 0
    %1166 = vmatprep.subr.bf16.mxu0 0
    %1167 = vmatpush1.bf16.xpose.msra.mxu0 0
    %1168 = vmatprep.subr.bf16.mxu0 0
    %1169 = vmatpush1.bf16.xpose.msra.mxu0 0
    %1170 = vmatprep.subr.bf16.mxu0 0
    %1171 = vmatpush1.bf16.xpose.msra.mxu0 %v1154
    %1172 = vmatprep.subr.bf16.mxu0 0
    %1173 = vmatpush2.bf16.xpose.msra.mxu0 0
    %1174 = vmatprep.subr.bf16.mxu0 0
    %1175 = vmatpush2.bf16.xpose.msra.mxu0 0
    %1176 = vmatprep.subr.bf16.mxu0 0
    %1177 = vmatpush2.bf16.xpose.msra.mxu0 0
    %1178 = vmatprep.subr.bf16.mxu0 0
    %1179 = vmatpush2.bf16.xpose.msra.mxu0 0
    %1180 = vmatprep.subr.bf16.mxu0 0
    %1181 = vmatpush2.bf16.xpose.msra.mxu0 0
    %1182 = vmatprep.subr.bf16.mxu0 0
    %1183 = vmatpush2.bf16.xpose.msra.mxu0 0
    %1184 = vmatprep.subr.bf16.mxu0 0
    %1185 = vmatpush2.bf16.xpose.msra.mxu0 0
    %1186 = vmatprep.subr.bf16.mxu0 0
    %1187 = vmatpush2.bf16.xpose.msra.mxu0 0
    %1188 = vmatprep.mubr.bf16.mxu0 0
    %1189 = vmatmul.mubr.bf16.gmra.mxu0 %v1151
    %v1190 = vpop.f32.mrf.mxu0
    %v1191 = vadd.f32 0.0, %v1190
    %v1192 = vpop.f32.mrf.mxu0
    %v1193 = vpop.f32.mrf.mxu0
    %v1194 = vadd.f32 0.0, %v1193
    %v1195 = vpop.f32.mrf.mxu0
    %1196 = vdwg.mxu0
    %v1197 = vsel %vm716, %v1032, -inf
    %1198 = vmax.xlane.f32.xlu0 %v1197
    %v1199 = vpop.xlane.xlu0 %1198
    %v1200 = vsel %vm716, %v1035, -inf
    %1201 = vmax.xlane.f32.xlu0 %v1200
    %v1202 = vpop.xlane.xlu0 %1201
    %v1203 = vsel %vm716, %v1085, -inf
    %1204 = vmax.xlane.f32.xlu0 %v1203
    %v1205 = vpop.xlane.xlu0 %1204
    %v1206 = vsel %vm716, %v1088, -inf
    %1207 = vmax.xlane.f32.xlu0 %v1206
    %v1208 = vpop.xlane.xlu0 %1207
    %v1209 = vsel %vm716, %v1138, -inf
    %1210 = vmax.xlane.f32.xlu0 %v1209
    %v1211 = vpop.xlane.xlu0 %1210
    %v1212 = vsel %vm716, %v1141, -inf
    %1213 = vmax.xlane.f32.xlu0 %v1212
    %v1214 = vpop.xlane.xlu0 %1213
    %v1215 = vsel %vm716, %v1191, -inf
    %1216 = vmax.xlane.f32.xlu0 %v1215
    %v1217 = vpop.xlane.xlu0 %1216
    %v1218 = vsel %vm716, %v1194, -inf
    %1219 = vmax.xlane.f32.xlu0 %v1218
    %v1220 = vpop.xlane.xlu0 %1219
    %v1221 = vsub.f32 %v1032, %v1199
    %v1222 = vsub.f32 %v1035, %v1202
    %v1223 = vsub.f32 %v1085, %v1205
    %v1224 = vsub.f32 %v1088, %v1208
    %v1225 = vsub.f32 %v1138, %v1211
    %v1226 = vsub.f32 %v1141, %v1214
    %v1227 = vsub.f32 %v1191, %v1217
    %v1228 = vsub.f32 %v1194, %v1220
    %v1229 = vmul.f32 %v1221, 1.442695
    %v1230 = vpow.pop %v1229
    %v1231 = vmul.f32 %v1222, 1.442695
    %v1232 = vpow.pop %v1231
    %v1233 = vmul.f32 %v1223, 1.442695
    %v1234 = vpow.pop %v1233
    %v1235 = vmul.f32 %v1224, 1.442695
    %v1236 = vpow.pop %v1235
    %v1237 = vmul.f32 %v1225, 1.442695
    %v1238 = vpow.pop %v1237
    %v1239 = vmul.f32 %v1226, 1.442695
    %v1240 = vpow.pop %v1239
    %v1241 = vmul.f32 %v1227, 1.442695
    %v1242 = vpow.pop %v1241
    %v1243 = vmul.f32 %v1228, 1.442695
    %v1244 = vpow.pop %v1243
    %v1245 = vsel %vm716, %v1230, 0.0
    %1246 = vadd.xlane.f32.xlu0 %v1245
    %v1247 = vpop.xlane.xlu0 %1246
    %v1248 = vsel %vm716, %v1232, 0.0
    %1249 = vadd.xlane.f32.xlu0 %v1248
    %v1250 = vpop.xlane.xlu0 %1249
    %v1251 = vsel %vm716, %v1234, 0.0
    %1252 = vadd.xlane.f32.xlu0 %v1251
    %v1253 = vpop.xlane.xlu0 %1252
    %v1254 = vsel %vm716, %v1236, 0.0
    %1255 = vadd.xlane.f32.xlu0 %v1254
    %v1256 = vpop.xlane.xlu0 %1255
    %v1257 = vsel %vm716, %v1238, 0.0
    %1258 = vadd.xlane.f32.xlu0 %v1257
    %v1259 = vpop.xlane.xlu0 %1258
    %v1260 = vsel %vm716, %v1240, 0.0
    %1261 = vadd.xlane.f32.xlu0 %v1260
    %v1262 = vpop.xlane.xlu0 %1261
    %v1263 = vsel %vm716, %v1242, 0.0
    %1264 = vadd.xlane.f32.xlu0 %v1263
    %v1265 = vpop.xlane.xlu0 %1264
    %v1266 = vsel %vm716, %v1244, 0.0
    %1267 = vadd.xlane.f32.xlu0 %v1266
    %v1268 = vpop.xlane.xlu0 %1267
    %v1269 = vrcp.pop %v1247
    %v1270 = vrcp.pop %v1250
    %v1271 = vrcp.pop %v1253
    %v1272 = vrcp.pop %v1256
    %v1273 = vrcp.pop %v1259
    %v1274 = vrcp.pop %v1262
    %v1275 = vrcp.pop %v1265
    %v1276 = vrcp.pop %v1268
    %v1277 = vmul.f32 %v1230, %v1269
    %v1278 = vmul.f32 %v1232, %v1270
    %v1279 = vmul.f32 %v1234, %v1271
    %v1280 = vmul.f32 %v1236, %v1272
    %v1281 = vmul.f32 %v1238, %v1273
    %v1282 = vmul.f32 %v1240, %v1274
    %v1283 = vmul.f32 %v1242, %v1275
    %v1284 = vmul.f32 %v1244, %v1276
    %v1285 = vpack.c.bf16 %v1278, %v1277
    %v1286 = vpack.c.bf16 %v1280, %v1279
    %v1287 = vpack.c.bf16 %v1282, %v1281
    %v1288 = vpack.c.bf16 %v1284, %v1283
    %1290 = vrot.lane.b32.xlu0 %v523, 96
    %v1291 = vpop.permute.xlu0 %1290
    %v1294 = vsel %vm716, %v1285, 0
    %1296 = vmatprep.subr.bf16.mxu0 0
    %1297 = vmatpush1.bf16.msra.mxu0 0
    %1298 = vmatprep.subr.bf16.mxu0 0
    %1299 = vmatpush1.bf16.msra.mxu0 0
    %1300 = vmatprep.subr.bf16.mxu0 0
    %1301 = vmatpush1.bf16.msra.mxu0 0
    %1302 = vmatprep.subr.bf16.mxu0 0
    %1303 = vmatpush1.bf16.msra.mxu0 0
    %1304 = vmatprep.subr.bf16.mxu0 0
    %1305 = vmatpush1.bf16.msra.mxu0 0
    %1306 = vmatprep.subr.bf16.mxu0 0
    %1307 = vmatpush1.bf16.msra.mxu0 0
    %1308 = vmatprep.subr.bf16.mxu0 0
    %1309 = vmatpush1.bf16.msra.mxu0 0
    %1310 = vmatprep.subr.bf16.mxu0 0
    %1311 = vmatpush1.bf16.msra.mxu0 %v1291
    %1312 = vmatprep.subr.bf16.mxu0 0
    %1313 = vmatpush2.bf16.msra.mxu0 0
    %1314 = vmatprep.subr.bf16.mxu0 0
    %1315 = vmatpush2.bf16.msra.mxu0 0
    %1316 = vmatprep.subr.bf16.mxu0 0
    %1317 = vmatpush2.bf16.msra.mxu0 0
    %1318 = vmatprep.subr.bf16.mxu0 0
    %1319 = vmatpush2.bf16.msra.mxu0 0
    %1320 = vmatprep.subr.bf16.mxu0 0
    %1321 = vmatpush2.bf16.msra.mxu0 0
    %1322 = vmatprep.subr.bf16.mxu0 0
    %1323 = vmatpush2.bf16.msra.mxu0 0
    %1324 = vmatprep.subr.bf16.mxu0 0
    %1325 = vmatpush2.bf16.msra.mxu0 0
    %1326 = vmatprep.subr.bf16.mxu0 0
    %1327 = vmatpush2.bf16.msra.mxu0 0
    %1328 = vmatprep.mubr.bf16.mxu0 0
    %1329 = vmatmul.mubr.bf16.gmra.mxu0 %v1294
    %v1330 = vpop.f32.mrf.mxu0
    %v1331 = vadd.f32 0.0, %v1330
    %v1332 = vpop.f32.mrf.mxu0
    %v1333 = vpop.f32.mrf.mxu0
    %v1334 = vadd.f32 0.0, %v1333
    %v1335 = vpop.f32.mrf.mxu0
    %1336 = vdwg.mxu0
    %1338 = vrot.lane.b32.xlu0 %v524, 96
    %v1339 = vpop.permute.xlu0 %1338
    %v1342 = vsel %vm716, %v1286, 0
    %1344 = vmatprep.subr.bf16.mxu0 0
    %1345 = vmatpush1.bf16.msra.mxu0 0
    %1346 = vmatprep.subr.bf16.mxu0 0
    %1347 = vmatpush1.bf16.msra.mxu0 0
    %1348 = vmatprep.subr.bf16.mxu0 0
    %1349 = vmatpush1.bf16.msra.mxu0 0
    %1350 = vmatprep.subr.bf16.mxu0 0
    %1351 = vmatpush1.bf16.msra.mxu0 0
    %1352 = vmatprep.subr.bf16.mxu0 0
    %1353 = vmatpush1.bf16.msra.mxu0 0
    %1354 = vmatprep.subr.bf16.mxu0 0
    %1355 = vmatpush1.bf16.msra.mxu0 0
    %1356 = vmatprep.subr.bf16.mxu0 0
    %1357 = vmatpush1.bf16.msra.mxu0 0
    %1358 = vmatprep.subr.bf16.mxu0 0
    %1359 = vmatpush1.bf16.msra.mxu0 %v1339
    %1360 = vmatprep.subr.bf16.mxu0 0
    %1361 = vmatpush2.bf16.msra.mxu0 0
    %1362 = vmatprep.subr.bf16.mxu0 0
    %1363 = vmatpush2.bf16.msra.mxu0 0
    %1364 = vmatprep.subr.bf16.mxu0 0
    %1365 = vmatpush2.bf16.msra.mxu0 0
    %1366 = vmatprep.subr.bf16.mxu0 0
    %1367 = vmatpush2.bf16.msra.mxu0 0
    %1368 = vmatprep.subr.bf16.mxu0 0
    %1369 = vmatpush2.bf16.msra.mxu0 0
    %1370 = vmatprep.subr.bf16.mxu0 0
    %1371 = vmatpush2.bf16.msra.mxu0 0
    %1372 = vmatprep.subr.bf16.mxu0 0
    %1373 = vmatpush2.bf16.msra.mxu0 0
    %1374 = vmatprep.subr.bf16.mxu0 0
    %1375 = vmatpush2.bf16.msra.mxu0 0
    %1376 = vmatprep.mubr.bf16.mxu0 0
    %1377 = vmatmul.mubr.bf16.gmra.mxu0 %v1342
    %v1378 = vpop.f32.mrf.mxu0
    %v1379 = vadd.f32 0.0, %v1378
    %v1380 = vpop.f32.mrf.mxu0
    %v1381 = vpop.f32.mrf.mxu0
    %v1382 = vadd.f32 0.0, %v1381
    %v1383 = vpop.f32.mrf.mxu0
    %1384 = vdwg.mxu0
    %1386 = vrot.lane.b32.xlu0 %v525, 96
    %v1387 = vpop.permute.xlu0 %1386
    %v1390 = vsel %vm716, %v1287, 0
    %1392 = vmatprep.subr.bf16.mxu0 0
    %1393 = vmatpush1.bf16.msra.mxu0 0
    %1394 = vmatprep.subr.bf16.mxu0 0
    %1395 = vmatpush1.bf16.msra.mxu0 0
    %1396 = vmatprep.subr.bf16.mxu0 0
    %1397 = vmatpush1.bf16.msra.mxu0 0
    %1398 = vmatprep.subr.bf16.mxu0 0
    %1399 = vmatpush1.bf16.msra.mxu0 0
    %1400 = vmatprep.subr.bf16.mxu0 0
    %1401 = vmatpush1.bf16.msra.mxu0 0
    %1402 = vmatprep.subr.bf16.mxu0 0
    %1403 = vmatpush1.bf16.msra.mxu0 0
    %1404 = vmatprep.subr.bf16.mxu0 0
    %1405 = vmatpush1.bf16.msra.mxu0 0
    %1406 = vmatprep.subr.bf16.mxu0 0
    %1407 = vmatpush1.bf16.msra.mxu0 %v1387
    %1408 = vmatprep.subr.bf16.mxu0 0
    %1409 = vmatpush2.bf16.msra.mxu0 0
    %1410 = vmatprep.subr.bf16.mxu0 0
    %1411 = vmatpush2.bf16.msra.mxu0 0
    %1412 = vmatprep.subr.bf16.mxu0 0
    %1413 = vmatpush2.bf16.msra.mxu0 0
    %1414 = vmatprep.subr.bf16.mxu0 0
    %1415 = vmatpush2.bf16.msra.mxu0 0
    %1416 = vmatprep.subr.bf16.mxu0 0
    %1417 = vmatpush2.bf16.msra.mxu0 0
    %1418 = vmatprep.subr.bf16.mxu0 0
    %1419 = vmatpush2.bf16.msra.mxu0 0
    %1420 = vmatprep.subr.bf16.mxu0 0
    %1421 = vmatpush2.bf16.msra.mxu0 0
    %1422 = vmatprep.subr.bf16.mxu0 0
    %1423 = vmatpush2.bf16.msra.mxu0 0
    %1424 = vmatprep.mubr.bf16.mxu0 0
    %1425 = vmatmul.mubr.bf16.gmra.mxu0 %v1390
    %v1426 = vpop.f32.mrf.mxu0
    %v1427 = vadd.f32 0.0, %v1426
    %v1428 = vpop.f32.mrf.mxu0
    %v1429 = vpop.f32.mrf.mxu0
    %v1430 = vadd.f32 0.0, %v1429
    %v1431 = vpop.f32.mrf.mxu0
    %1432 = vdwg.mxu0
    %1434 = vrot.lane.b32.xlu0 %v526, 96
    %v1435 = vpop.permute.xlu0 %1434
    %v1438 = vsel %vm716, %v1288, 0
    %1440 = vmatprep.subr.bf16.mxu0 0
    %1441 = vmatpush1.bf16.msra.mxu0 0
    %1442 = vmatprep.subr.bf16.mxu0 0
    %1443 = vmatpush1.bf16.msra.mxu0 0
    %1444 = vmatprep.subr.bf16.mxu0 0
    %1445 = vmatpush1.bf16.msra.mxu0 0
    %1446 = vmatprep.subr.bf16.mxu0 0
    %1447 = vmatpush1.bf16.msra.mxu0 0
    %1448 = vmatprep.subr.bf16.mxu0 0
    %1449 = vmatpush1.bf16.msra.mxu0 0
    %1450 = vmatprep.subr.bf16.mxu0 0
    %1451 = vmatpush1.bf16.msra.mxu0 0
    %1452 = vmatprep.subr.bf16.mxu0 0
    %1453 = vmatpush1.bf16.msra.mxu0 0
    %1454 = vmatprep.subr.bf16.mxu0 0
    %1455 = vmatpush1.bf16.msra.mxu0 %v1435
    %1456 = vmatprep.subr.bf16.mxu0 0
    %1457 = vmatpush2.bf16.msra.mxu0 0
    %1458 = vmatprep.subr.bf16.mxu0 0
    %1459 = vmatpush2.bf16.msra.mxu0 0
    %1460 = vmatprep.subr.bf16.mxu0 0
    %1461 = vmatpush2.bf16.msra.mxu0 0
    %1462 = vmatprep.subr.bf16.mxu0 0
    %1463 = vmatpush2.bf16.msra.mxu0 0
    %1464 = vmatprep.subr.bf16.mxu0 0
    %1465 = vmatpush2.bf16.msra.mxu0 0
    %1466 = vmatprep.subr.bf16.mxu0 0
    %1467 = vmatpush2.bf16.msra.mxu0 0
    %1468 = vmatprep.subr.bf16.mxu0 0
    %1469 = vmatpush2.bf16.msra.mxu0 0
    %1470 = vmatprep.subr.bf16.mxu0 0
    %1471 = vmatpush2.bf16.msra.mxu0 0
    %1472 = vmatprep.mubr.bf16.mxu0 0
    %1473 = vmatmul.mubr.bf16.gmra.mxu0 %v1438
    %v1474 = vpop.f32.mrf.mxu0
    %v1475 = vadd.f32 0.0, %v1474
    %v1476 = vpop.f32.mrf.mxu0
    %v1477 = vpop.f32.mrf.mxu0
    %v1478 = vadd.f32 0.0, %v1477
    %v1479 = vpop.f32.mrf.mxu0
    %1480 = vdwg.mxu0
    %1481 = vrot.lane.b32.xlu0 %v515, 64
    %v1482 = vpop.permute.xlu0 %1481
    %1483 = vrot.lane.b32.xlu0 %v519, 64
    %v1484 = vpop.permute.xlu0 %1483
    %v1486 = vsel %vm527, %v1482, 0
    %v1489 = vsel %vm527, %v1484, 0
    %1491 = vmatprep.subr.bf16.mxu0 0
    %1492 = vmatpush1.bf16.xpose.msra.mxu0 0
    %1493 = vmatprep.subr.bf16.mxu0 0
    %1494 = vmatpush1.bf16.xpose.msra.mxu0 0
    %1495 = vmatprep.subr.bf16.mxu0 0
    %1496 = vmatpush1.bf16.xpose.msra.mxu0 0
    %1497 = vmatprep.subr.bf16.mxu0 0
    %1498 = vmatpush1.bf16.xpose.msra.mxu0 0
    %1499 = vmatprep.subr.bf16.mxu0 0
    %1500 = vmatpush1.bf16.xpose.msra.mxu0 0
    %1501 = vmatprep.subr.bf16.mxu0 0
    %1502 = vmatpush1.bf16.xpose.msra.mxu0 0
    %1503 = vmatprep.subr.bf16.mxu0 0
    %1504 = vmatpush1.bf16.xpose.msra.mxu0 0
    %1505 = vmatprep.subr.bf16.mxu0 0
    %1506 = vmatpush1.bf16.xpose.msra.mxu0 %v1489
    %1507 = vmatprep.subr.bf16.mxu0 0
    %1508 = vmatpush2.bf16.xpose.msra.mxu0 0
    %1509 = vmatprep.subr.bf16.mxu0 0
    %1510 = vmatpush2.bf16.xpose.msra.mxu0 0
    %1511 = vmatprep.subr.bf16.mxu0 0
    %1512 = vmatpush2.bf16.xpose.msra.mxu0 0
    %1513 = vmatprep.subr.bf16.mxu0 0
    %1514 = vmatpush2.bf16.xpose.msra.mxu0 0
    %1515 = vmatprep.subr.bf16.mxu0 0
    %1516 = vmatpush2.bf16.xpose.msra.mxu0 0
    %1517 = vmatprep.subr.bf16.mxu0 0
    %1518 = vmatpush2.bf16.xpose.msra.mxu0 0
    %1519 = vmatprep.subr.bf16.mxu0 0
    %1520 = vmatpush2.bf16.xpose.msra.mxu0 0
    %1521 = vmatprep.subr.bf16.mxu0 0
    %1522 = vmatpush2.bf16.xpose.msra.mxu0 0
    %1523 = vmatprep.mubr.bf16.mxu0 0
    %1524 = vmatmul.mubr.bf16.gmra.mxu0 %v1486
    %v1525 = vpop.f32.mrf.mxu0
    %v1526 = vadd.f32 0.0, %v1525
    %v1527 = vpop.f32.mrf.mxu0
    %v1528 = vpop.f32.mrf.mxu0
    %v1529 = vadd.f32 0.0, %v1528
    %v1530 = vpop.f32.mrf.mxu0
    %1531 = vdwg.mxu0
    %1532 = vrot.lane.b32.xlu0 %v516, 64
    %v1533 = vpop.permute.xlu0 %1532
    %1534 = vrot.lane.b32.xlu0 %v520, 64
    %v1535 = vpop.permute.xlu0 %1534
    %v1537 = vsel %vm527, %v1533, 0
    %v1540 = vsel %vm527, %v1535, 0
    %1542 = vmatprep.subr.bf16.mxu0 0
    %1543 = vmatpush1.bf16.xpose.msra.mxu0 0
    %1544 = vmatprep.subr.bf16.mxu0 0
    %1545 = vmatpush1.bf16.xpose.msra.mxu0 0
    %1546 = vmatprep.subr.bf16.mxu0 0
    %1547 = vmatpush1.bf16.xpose.msra.mxu0 0
    %1548 = vmatprep.subr.bf16.mxu0 0
    %1549 = vmatpush1.bf16.xpose.msra.mxu0 0
    %1550 = vmatprep.subr.bf16.mxu0 0
    %1551 = vmatpush1.bf16.xpose.msra.mxu0 0
    %1552 = vmatprep.subr.bf16.mxu0 0
    %1553 = vmatpush1.bf16.xpose.msra.mxu0 0
    %1554 = vmatprep.subr.bf16.mxu0 0
    %1555 = vmatpush1.bf16.xpose.msra.mxu0 0
    %1556 = vmatprep.subr.bf16.mxu0 0
    %1557 = vmatpush1.bf16.xpose.msra.mxu0 %v1540
    %1558 = vmatprep.subr.bf16.mxu0 0
    %1559 = vmatpush2.bf16.xpose.msra.mxu0 0
    %1560 = vmatprep.subr.bf16.mxu0 0
    %1561 = vmatpush2.bf16.xpose.msra.mxu0 0
    %1562 = vmatprep.subr.bf16.mxu0 0
    %1563 = vmatpush2.bf16.xpose.msra.mxu0 0
    %1564 = vmatprep.subr.bf16.mxu0 0
    %1565 = vmatpush2.bf16.xpose.msra.mxu0 0
    %1566 = vmatprep.subr.bf16.mxu0 0
    %1567 = vmatpush2.bf16.xpose.msra.mxu0 0
    %1568 = vmatprep.subr.bf16.mxu0 0
    %1569 = vmatpush2.bf16.xpose.msra.mxu0 0
    %1570 = vmatprep.subr.bf16.mxu0 0
    %1571 = vmatpush2.bf16.xpose.msra.mxu0 0
    %1572 = vmatprep.subr.bf16.mxu0 0
    %1573 = vmatpush2.bf16.xpose.msra.mxu0 0
    %1574 = vmatprep.mubr.bf16.mxu0 0
    %1575 = vmatmul.mubr.bf16.gmra.mxu0 %v1537
    %v1576 = vpop.f32.mrf.mxu0
    %v1577 = vadd.f32 0.0, %v1576
    %v1578 = vpop.f32.mrf.mxu0
    %v1579 = vpop.f32.mrf.mxu0
    %v1580 = vadd.f32 0.0, %v1579
    %v1581 = vpop.f32.mrf.mxu0
    %1582 = vdwg.mxu0
    %1583 = vrot.lane.b32.xlu0 %v517, 64
    %v1584 = vpop.permute.xlu0 %1583
    %1585 = vrot.lane.b32.xlu0 %v521, 64
    %v1586 = vpop.permute.xlu0 %1585
    %v1588 = vsel %vm527, %v1584, 0
    %v1591 = vsel %vm527, %v1586, 0
    %1593 = vmatprep.subr.bf16.mxu0 0
    %1594 = vmatpush1.bf16.xpose.msra.mxu0 0
    %1595 = vmatprep.subr.bf16.mxu0 0
    %1596 = vmatpush1.bf16.xpose.msra.mxu0 0
    %1597 = vmatprep.subr.bf16.mxu0 0
    %1598 = vmatpush1.bf16.xpose.msra.mxu0 0
    %1599 = vmatprep.subr.bf16.mxu0 0
    %1600 = vmatpush1.bf16.xpose.msra.mxu0 0
    %1601 = vmatprep.subr.bf16.mxu0 0
    %1602 = vmatpush1.bf16.xpose.msra.mxu0 0
    %1603 = vmatprep.subr.bf16.mxu0 0
    %1604 = vmatpush1.bf16.xpose.msra.mxu0 0
    %1605 = vmatprep.subr.bf16.mxu0 0
    %1606 = vmatpush1.bf16.xpose.msra.mxu0 0
    %1607 = vmatprep.subr.bf16.mxu0 0
    %1608 = vmatpush1.bf16.xpose.msra.mxu0 %v1591
    %1609 = vmatprep.subr.bf16.mxu0 0
    %1610 = vmatpush2.bf16.xpose.msra.mxu0 0
    %1611 = vmatprep.subr.bf16.mxu0 0
    %1612 = vmatpush2.bf16.xpose.msra.mxu0 0
    %1613 = vmatprep.subr.bf16.mxu0 0
    %1614 = vmatpush2.bf16.xpose.msra.mxu0 0
    %1615 = vmatprep.subr.bf16.mxu0 0
    %1616 = vmatpush2.bf16.xpose.msra.mxu0 0
    %1617 = vmatprep.subr.bf16.mxu0 0
    %1618 = vmatpush2.bf16.xpose.msra.mxu0 0
    %1619 = vmatprep.subr.bf16.mxu0 0
    %1620 = vmatpush2.bf16.xpose.msra.mxu0 0
    %1621 = vmatprep.subr.bf16.mxu0 0
    %1622 = vmatpush2.bf16.xpose.msra.mxu0 0
    %1623 = vmatprep.subr.bf16.mxu0 0
    %1624 = vmatpush2.bf16.xpose.msra.mxu0 0
    %1625 = vmatprep.mubr.bf16.mxu0 0
    %1626 = vmatmul.mubr.bf16.gmra.mxu0 %v1588
    %v1627 = vpop.f32.mrf.mxu0
    %v1628 = vadd.f32 0.0, %v1627
    %v1629 = vpop.f32.mrf.mxu0
    %v1630 = vpop.f32.mrf.mxu0
    %v1631 = vadd.f32 0.0, %v1630
    %v1632 = vpop.f32.mrf.mxu0
    %1633 = vdwg.mxu0
    %1634 = vrot.lane.b32.xlu0 %v518, 64
    %v1635 = vpop.permute.xlu0 %1634
    %1636 = vrot.lane.b32.xlu0 %v522, 64
    %v1637 = vpop.permute.xlu0 %1636
    %v1639 = vsel %vm527, %v1635, 0
    %v1642 = vsel %vm527, %v1637, 0
    %1644 = vmatprep.subr.bf16.mxu0 0
    %1645 = vmatpush1.bf16.xpose.msra.mxu0 0
    %1646 = vmatprep.subr.bf16.mxu0 0
    %1647 = vmatpush1.bf16.xpose.msra.mxu0 0
    %1648 = vmatprep.subr.bf16.mxu0 0
    %1649 = vmatpush1.bf16.xpose.msra.mxu0 0
    %1650 = vmatprep.subr.bf16.mxu0 0
    %1651 = vmatpush1.bf16.xpose.msra.mxu0 0
    %1652 = vmatprep.subr.bf16.mxu0 0
    %1653 = vmatpush1.bf16.xpose.msra.mxu0 0
    %1654 = vmatprep.subr.bf16.mxu0 0
    %1655 = vmatpush1.bf16.xpose.msra.mxu0 0
    %1656 = vmatprep.subr.bf16.mxu0 0
    %1657 = vmatpush1.bf16.xpose.msra.mxu0 0
    %1658 = vmatprep.subr.bf16.mxu0 0
    %1659 = vmatpush1.bf16.xpose.msra.mxu0 %v1642
    %1660 = vmatprep.subr.bf16.mxu0 0
    %1661 = vmatpush2.bf16.xpose.msra.mxu0 0
    %1662 = vmatprep.subr.bf16.mxu0 0
    %1663 = vmatpush2.bf16.xpose.msra.mxu0 0
    %1664 = vmatprep.subr.bf16.mxu0 0
    %1665 = vmatpush2.bf16.xpose.msra.mxu0 0
    %1666 = vmatprep.subr.bf16.mxu0 0
    %1667 = vmatpush2.bf16.xpose.msra.mxu0 0
    %1668 = vmatprep.subr.bf16.mxu0 0
    %1669 = vmatpush2.bf16.xpose.msra.mxu0 0
    %1670 = vmatprep.subr.bf16.mxu0 0
    %1671 = vmatpush2.bf16.xpose.msra.mxu0 0
    %1672 = vmatprep.subr.bf16.mxu0 0
    %1673 = vmatpush2.bf16.xpose.msra.mxu0 0
    %1674 = vmatprep.subr.bf16.mxu0 0
    %1675 = vmatpush2.bf16.xpose.msra.mxu0 0
    %1676 = vmatprep.mubr.bf16.mxu0 0
    %1677 = vmatmul.mubr.bf16.gmra.mxu0 %v1639
    %v1678 = vpop.f32.mrf.mxu0
    %v1679 = vadd.f32 0.0, %v1678
    %v1680 = vpop.f32.mrf.mxu0
    %v1681 = vpop.f32.mrf.mxu0
    %v1682 = vadd.f32 0.0, %v1681
    %v1683 = vpop.f32.mrf.mxu0
    %1684 = vdwg.mxu0
    %v1685 = vsel %vm716, %v1526, -inf
    %1686 = vmax.xlane.f32.xlu0 %v1685
    %v1687 = vpop.xlane.xlu0 %1686
    %v1688 = vsel %vm716, %v1529, -inf
    %1689 = vmax.xlane.f32.xlu0 %v1688
    %v1690 = vpop.xlane.xlu0 %1689
    %v1691 = vsel %vm716, %v1577, -inf
    %1692 = vmax.xlane.f32.xlu0 %v1691
    %v1693 = vpop.xlane.xlu0 %1692
    %v1694 = vsel %vm716, %v1580, -inf
    %1695 = vmax.xlane.f32.xlu0 %v1694
    %v1696 = vpop.xlane.xlu0 %1695
    %v1697 = vsel %vm716, %v1628, -inf
    %1698 = vmax.xlane.f32.xlu0 %v1697
    %v1699 = vpop.xlane.xlu0 %1698
    %v1700 = vsel %vm716, %v1631, -inf
    %1701 = vmax.xlane.f32.xlu0 %v1700
    %v1702 = vpop.xlane.xlu0 %1701
    %v1703 = vsel %vm716, %v1679, -inf
    %1704 = vmax.xlane.f32.xlu0 %v1703
    %v1705 = vpop.xlane.xlu0 %1704
    %v1706 = vsel %vm716, %v1682, -inf
    %1707 = vmax.xlane.f32.xlu0 %v1706
    %v1708 = vpop.xlane.xlu0 %1707
    %v1709 = vsub.f32 %v1526, %v1687
    %v1710 = vsub.f32 %v1529, %v1690
    %v1711 = vsub.f32 %v1577, %v1693
    %v1712 = vsub.f32 %v1580, %v1696
    %v1713 = vsub.f32 %v1628, %v1699
    %v1714 = vsub.f32 %v1631, %v1702
    %v1715 = vsub.f32 %v1679, %v1705
    %v1716 = vsub.f32 %v1682, %v1708
    %v1717 = vmul.f32 %v1709, 1.442695
    %v1718 = vpow.pop %v1717
    %v1719 = vmul.f32 %v1710, 1.442695
    %v1720 = vpow.pop %v1719
    %v1721 = vmul.f32 %v1711, 1.442695
    %v1722 = vpow.pop %v1721
    %v1723 = vmul.f32 %v1712, 1.442695
    %v1724 = vpow.pop %v1723
    %v1725 = vmul.f32 %v1713, 1.442695
    %v1726 = vpow.pop %v1725
    %v1727 = vmul.f32 %v1714, 1.442695
    %v1728 = vpow.pop %v1727
    %v1729 = vmul.f32 %v1715, 1.442695
    %v1730 = vpow.pop %v1729
    %v1731 = vmul.f32 %v1716, 1.442695
    %v1732 = vpow.pop %v1731
    %v1733 = vsel %vm716, %v1718, 0.0
    %1734 = vadd.xlane.f32.xlu0 %v1733
    %v1735 = vpop.xlane.xlu0 %1734
    %v1736 = vsel %vm716, %v1720, 0.0
    %1737 = vadd.xlane.f32.xlu0 %v1736
    %v1738 = vpop.xlane.xlu0 %1737
    %v1739 = vsel %vm716, %v1722, 0.0
    %1740 = vadd.xlane.f32.xlu0 %v1739
    %v1741 = vpop.xlane.xlu0 %1740
    %v1742 = vsel %vm716, %v1724, 0.0
    %1743 = vadd.xlane.f32.xlu0 %v1742
    %v1744 = vpop.xlane.xlu0 %1743
    %v1745 = vsel %vm716, %v1726, 0.0
    %1746 = vadd.xlane.f32.xlu0 %v1745
    %v1747 = vpop.xlane.xlu0 %1746
    %v1748 = vsel %vm716, %v1728, 0.0
    %1749 = vadd.xlane.f32.xlu0 %v1748
    %v1750 = vpop.xlane.xlu0 %1749
    %v1751 = vsel %vm716, %v1730, 0.0
    %1752 = vadd.xlane.f32.xlu0 %v1751
    %v1753 = vpop.xlane.xlu0 %1752
    %v1754 = vsel %vm716, %v1732, 0.0
    %1755 = vadd.xlane.f32.xlu0 %v1754
    %v1756 = vpop.xlane.xlu0 %1755
    %v1757 = vrcp.pop %v1735
    %v1758 = vrcp.pop %v1738
    %v1759 = vrcp.pop %v1741
    %v1760 = vrcp.pop %v1744
    %v1761 = vrcp.pop %v1747
    %v1762 = vrcp.pop %v1750
    %v1763 = vrcp.pop %v1753
    %v1764 = vrcp.pop %v1756
    %v1765 = vmul.f32 %v1718, %v1757
    %v1766 = vmul.f32 %v1720, %v1758
    %v1767 = vmul.f32 %v1722, %v1759
    %v1768 = vmul.f32 %v1724, %v1760
    %v1769 = vmul.f32 %v1726, %v1761
    %v1770 = vmul.f32 %v1728, %v1762
    %v1771 = vmul.f32 %v1730, %v1763
    %v1772 = vmul.f32 %v1732, %v1764
    %v1773 = vpack.c.bf16 %v1766, %v1765
    %v1774 = vpack.c.bf16 %v1768, %v1767
    %v1775 = vpack.c.bf16 %v1770, %v1769
    %v1776 = vpack.c.bf16 %v1772, %v1771
    %1777 = vrot.lane.b32.xlu0 %v523, 64
    %v1778 = vpop.permute.xlu0 %1777
    %v1781 = vsel %vm716, %v1773, 0
    %1783 = vmatprep.subr.bf16.mxu0 0
    %1784 = vmatpush1.bf16.msra.mxu0 0
    %1785 = vmatprep.subr.bf16.mxu0 0
    %1786 = vmatpush1.bf16.msra.mxu0 0
    %1787 = vmatprep.subr.bf16.mxu0 0
    %1788 = vmatpush1.bf16.msra.mxu0 0
    %1789 = vmatprep.subr.bf16.mxu0 0
    %1790 = vmatpush1.bf16.msra.mxu0 0
    %1791 = vmatprep.subr.bf16.mxu0 0
    %1792 = vmatpush1.bf16.msra.mxu0 0
    %1793 = vmatprep.subr.bf16.mxu0 0
    %1794 = vmatpush1.bf16.msra.mxu0 0
    %1795 = vmatprep.subr.bf16.mxu0 0
    %1796 = vmatpush1.bf16.msra.mxu0 0
    %1797 = vmatprep.subr.bf16.mxu0 0
    %1798 = vmatpush1.bf16.msra.mxu0 %v1778
    %1799 = vmatprep.subr.bf16.mxu0 0
    %1800 = vmatpush2.bf16.msra.mxu0 0
    %1801 = vmatprep.subr.bf16.mxu0 0
    %1802 = vmatpush2.bf16.msra.mxu0 0
    %1803 = vmatprep.subr.bf16.mxu0 0
    %1804 = vmatpush2.bf16.msra.mxu0 0
    %1805 = vmatprep.subr.bf16.mxu0 0
    %1806 = vmatpush2.bf16.msra.mxu0 0
    %1807 = vmatprep.subr.bf16.mxu0 0
    %1808 = vmatpush2.bf16.msra.mxu0 0
    %1809 = vmatprep.subr.bf16.mxu0 0
    %1810 = vmatpush2.bf16.msra.mxu0 0
    %1811 = vmatprep.subr.bf16.mxu0 0
    %1812 = vmatpush2.bf16.msra.mxu0 0
    %1813 = vmatprep.subr.bf16.mxu0 0
    %1814 = vmatpush2.bf16.msra.mxu0 0
    %1815 = vmatprep.mubr.bf16.mxu0 0
    %1816 = vmatmul.mubr.bf16.gmra.mxu0 %v1781
    %v1817 = vpop.f32.mrf.mxu0
    %v1818 = vadd.f32 0.0, %v1817
    %v1819 = vpop.f32.mrf.mxu0
    %v1820 = vpop.f32.mrf.mxu0
    %v1821 = vadd.f32 0.0, %v1820
    %v1822 = vpop.f32.mrf.mxu0
    %1823 = vdwg.mxu0
    %1824 = vrot.lane.b32.xlu0 %v524, 64
    %v1825 = vpop.permute.xlu0 %1824
    %v1828 = vsel %vm716, %v1774, 0
    %1830 = vmatprep.subr.bf16.mxu0 0
    %1831 = vmatpush1.bf16.msra.mxu0 0
    %1832 = vmatprep.subr.bf16.mxu0 0
    %1833 = vmatpush1.bf16.msra.mxu0 0
    %1834 = vmatprep.subr.bf16.mxu0 0
    %1835 = vmatpush1.bf16.msra.mxu0 0
    %1836 = vmatprep.subr.bf16.mxu0 0
    %1837 = vmatpush1.bf16.msra.mxu0 0
    %1838 = vmatprep.subr.bf16.mxu0 0
    %1839 = vmatpush1.bf16.msra.mxu0 0
    %1840 = vmatprep.subr.bf16.mxu0 0
    %1841 = vmatpush1.bf16.msra.mxu0 0
    %1842 = vmatprep.subr.bf16.mxu0 0
    %1843 = vmatpush1.bf16.msra.mxu0 0
    %1844 = vmatprep.subr.bf16.mxu0 0
    %1845 = vmatpush1.bf16.msra.mxu0 %v1825
    %1846 = vmatprep.subr.bf16.mxu0 0
    %1847 = vmatpush2.bf16.msra.mxu0 0
    %1848 = vmatprep.subr.bf16.mxu0 0
    %1849 = vmatpush2.bf16.msra.mxu0 0
    %1850 = vmatprep.subr.bf16.mxu0 0
    %1851 = vmatpush2.bf16.msra.mxu0 0
    %1852 = vmatprep.subr.bf16.mxu0 0
    %1853 = vmatpush2.bf16.msra.mxu0 0
    %1854 = vmatprep.subr.bf16.mxu0 0
    %1855 = vmatpush2.bf16.msra.mxu0 0
    %1856 = vmatprep.subr.bf16.mxu0 0
    %1857 = vmatpush2.bf16.msra.mxu0 0
    %1858 = vmatprep.subr.bf16.mxu0 0
    %1859 = vmatpush2.bf16.msra.mxu0 0
    %1860 = vmatprep.subr.bf16.mxu0 0
    %1861 = vmatpush2.bf16.msra.mxu0 0
    %1862 = vmatprep.mubr.bf16.mxu0 0
    %1863 = vmatmul.mubr.bf16.gmra.mxu0 %v1828
    %v1864 = vpop.f32.mrf.mxu0
    %v1865 = vadd.f32 0.0, %v1864
    %v1866 = vpop.f32.mrf.mxu0
    %v1867 = vpop.f32.mrf.mxu0
    %v1868 = vadd.f32 0.0, %v1867
    %v1869 = vpop.f32.mrf.mxu0
    %1870 = vdwg.mxu0
    %1871 = vrot.lane.b32.xlu0 %v525, 64
    %v1872 = vpop.permute.xlu0 %1871
    %v1875 = vsel %vm716, %v1775, 0
    %1877 = vmatprep.subr.bf16.mxu0 0
    %1878 = vmatpush1.bf16.msra.mxu0 0
    %1879 = vmatprep.subr.bf16.mxu0 0
    %1880 = vmatpush1.bf16.msra.mxu0 0
    %1881 = vmatprep.subr.bf16.mxu0 0
    %1882 = vmatpush1.bf16.msra.mxu0 0
    %1883 = vmatprep.subr.bf16.mxu0 0
    %1884 = vmatpush1.bf16.msra.mxu0 0
    %1885 = vmatprep.subr.bf16.mxu0 0
    %1886 = vmatpush1.bf16.msra.mxu0 0
    %1887 = vmatprep.subr.bf16.mxu0 0
    %1888 = vmatpush1.bf16.msra.mxu0 0
    %1889 = vmatprep.subr.bf16.mxu0 0
    %1890 = vmatpush1.bf16.msra.mxu0 0
    %1891 = vmatprep.subr.bf16.mxu0 0
    %1892 = vmatpush1.bf16.msra.mxu0 %v1872
    %1893 = vmatprep.subr.bf16.mxu0 0
    %1894 = vmatpush2.bf16.msra.mxu0 0
    %1895 = vmatprep.subr.bf16.mxu0 0
    %1896 = vmatpush2.bf16.msra.mxu0 0
    %1897 = vmatprep.subr.bf16.mxu0 0
    %1898 = vmatpush2.bf16.msra.mxu0 0
    %1899 = vmatprep.subr.bf16.mxu0 0
    %1900 = vmatpush2.bf16.msra.mxu0 0
    %1901 = vmatprep.subr.bf16.mxu0 0
    %1902 = vmatpush2.bf16.msra.mxu0 0
    %1903 = vmatprep.subr.bf16.mxu0 0
    %1904 = vmatpush2.bf16.msra.mxu0 0
    %1905 = vmatprep.subr.bf16.mxu0 0
    %1906 = vmatpush2.bf16.msra.mxu0 0
    %1907 = vmatprep.subr.bf16.mxu0 0
    %1908 = vmatpush2.bf16.msra.mxu0 0
    %1909 = vmatprep.mubr.bf16.mxu0 0
    %1910 = vmatmul.mubr.bf16.gmra.mxu0 %v1875
    %v1911 = vpop.f32.mrf.mxu0
    %v1912 = vadd.f32 0.0, %v1911
    %v1913 = vpop.f32.mrf.mxu0
    %v1914 = vpop.f32.mrf.mxu0
    %v1915 = vadd.f32 0.0, %v1914
    %v1916 = vpop.f32.mrf.mxu0
    %1917 = vdwg.mxu0
    %1918 = vrot.lane.b32.xlu0 %v526, 64
    %v1919 = vpop.permute.xlu0 %1918
    %v1922 = vsel %vm716, %v1776, 0
    %1924 = vmatprep.subr.bf16.mxu0 0
    %1925 = vmatpush1.bf16.msra.mxu0 0
    %1926 = vmatprep.subr.bf16.mxu0 0
    %1927 = vmatpush1.bf16.msra.mxu0 0
    %1928 = vmatprep.subr.bf16.mxu0 0
    %1929 = vmatpush1.bf16.msra.mxu0 0
    %1930 = vmatprep.subr.bf16.mxu0 0
    %1931 = vmatpush1.bf16.msra.mxu0 0
    %1932 = vmatprep.subr.bf16.mxu0 0
    %1933 = vmatpush1.bf16.msra.mxu0 0
    %1934 = vmatprep.subr.bf16.mxu0 0
    %1935 = vmatpush1.bf16.msra.mxu0 0
    %1936 = vmatprep.subr.bf16.mxu0 0
    %1937 = vmatpush1.bf16.msra.mxu0 0
    %1938 = vmatprep.subr.bf16.mxu0 0
    %1939 = vmatpush1.bf16.msra.mxu0 %v1919
    %1940 = vmatprep.subr.bf16.mxu0 0
    %1941 = vmatpush2.bf16.msra.mxu0 0
    %1942 = vmatprep.subr.bf16.mxu0 0
    %1943 = vmatpush2.bf16.msra.mxu0 0
    %1944 = vmatprep.subr.bf16.mxu0 0
    %1945 = vmatpush2.bf16.msra.mxu0 0
    %1946 = vmatprep.subr.bf16.mxu0 0
    %1947 = vmatpush2.bf16.msra.mxu0 0
    %1948 = vmatprep.subr.bf16.mxu0 0
    %1949 = vmatpush2.bf16.msra.mxu0 0
    %1950 = vmatprep.subr.bf16.mxu0 0
    %1951 = vmatpush2.bf16.msra.mxu0 0
    %1952 = vmatprep.subr.bf16.mxu0 0
    %1953 = vmatpush2.bf16.msra.mxu0 0
    %1954 = vmatprep.subr.bf16.mxu0 0
    %1955 = vmatpush2.bf16.msra.mxu0 0
    %1956 = vmatprep.mubr.bf16.mxu0 0
    %1957 = vmatmul.mubr.bf16.gmra.mxu0 %v1922
    %v1958 = vpop.f32.mrf.mxu0
    %v1959 = vadd.f32 0.0, %v1958
    %v1960 = vpop.f32.mrf.mxu0
    %v1961 = vpop.f32.mrf.mxu0
    %v1962 = vadd.f32 0.0, %v1961
    %v1963 = vpop.f32.mrf.mxu0
    %1964 = vdwg.mxu0
    %1965 = vrot.lane.b32.xlu0 %v515, 32
    %v1966 = vpop.permute.xlu0 %1965
    %1967 = vrot.lane.b32.xlu0 %v519, 32
    %v1968 = vpop.permute.xlu0 %1967
    %v1970 = vsel %vm527, %v1966, 0
    %v1973 = vsel %vm527, %v1968, 0
    %1975 = vmatprep.subr.bf16.mxu0 0
    %1976 = vmatpush1.bf16.xpose.msra.mxu0 0
    %1977 = vmatprep.subr.bf16.mxu0 0
    %1978 = vmatpush1.bf16.xpose.msra.mxu0 0
    %1979 = vmatprep.subr.bf16.mxu0 0
    %1980 = vmatpush1.bf16.xpose.msra.mxu0 0
    %1981 = vmatprep.subr.bf16.mxu0 0
    %1982 = vmatpush1.bf16.xpose.msra.mxu0 0
    %1983 = vmatprep.subr.bf16.mxu0 0
    %1984 = vmatpush1.bf16.xpose.msra.mxu0 0
    %1985 = vmatprep.subr.bf16.mxu0 0
    %1986 = vmatpush1.bf16.xpose.msra.mxu0 0
    %1987 = vmatprep.subr.bf16.mxu0 0
    %1988 = vmatpush1.bf16.xpose.msra.mxu0 0
    %1989 = vmatprep.subr.bf16.mxu0 0
    %1990 = vmatpush1.bf16.xpose.msra.mxu0 %v1973
    %1991 = vmatprep.subr.bf16.mxu0 0
    %1992 = vmatpush2.bf16.xpose.msra.mxu0 0
    %1993 = vmatprep.subr.bf16.mxu0 0
    %1994 = vmatpush2.bf16.xpose.msra.mxu0 0
    %1995 = vmatprep.subr.bf16.mxu0 0
    %1996 = vmatpush2.bf16.xpose.msra.mxu0 0
    %1997 = vmatprep.subr.bf16.mxu0 0
    %1998 = vmatpush2.bf16.xpose.msra.mxu0 0
    %1999 = vmatprep.subr.bf16.mxu0 0
    %2000 = vmatpush2.bf16.xpose.msra.mxu0 0
    %2001 = vmatprep.subr.bf16.mxu0 0
    %2002 = vmatpush2.bf16.xpose.msra.mxu0 0
    %2003 = vmatprep.subr.bf16.mxu0 0
    %2004 = vmatpush2.bf16.xpose.msra.mxu0 0
    %2005 = vmatprep.subr.bf16.mxu0 0
    %2006 = vmatpush2.bf16.xpose.msra.mxu0 0
    %2007 = vmatprep.mubr.bf16.mxu0 0
    %2008 = vmatmul.mubr.bf16.gmra.mxu0 %v1970
    %v2009 = vpop.f32.mrf.mxu0
    %v2010 = vadd.f32 0.0, %v2009
    %v2011 = vpop.f32.mrf.mxu0
    %v2012 = vpop.f32.mrf.mxu0
    %v2013 = vadd.f32 0.0, %v2012
    %v2014 = vpop.f32.mrf.mxu0
    %2015 = vdwg.mxu0
    %2016 = vrot.lane.b32.xlu0 %v516, 32
    %v2017 = vpop.permute.xlu0 %2016
    %2018 = vrot.lane.b32.xlu0 %v520, 32
    %v2019 = vpop.permute.xlu0 %2018
    %v2021 = vsel %vm527, %v2017, 0
    %v2024 = vsel %vm527, %v2019, 0
    %2026 = vmatprep.subr.bf16.mxu0 0
    %2027 = vmatpush1.bf16.xpose.msra.mxu0 0
    %2028 = vmatprep.subr.bf16.mxu0 0
    %2029 = vmatpush1.bf16.xpose.msra.mxu0 0
    %2030 = vmatprep.subr.bf16.mxu0 0
    %2031 = vmatpush1.bf16.xpose.msra.mxu0 0
    %2032 = vmatprep.subr.bf16.mxu0 0
    %2033 = vmatpush1.bf16.xpose.msra.mxu0 0
    %2034 = vmatprep.subr.bf16.mxu0 0
    %2035 = vmatpush1.bf16.xpose.msra.mxu0 0
    %2036 = vmatprep.subr.bf16.mxu0 0
    %2037 = vmatpush1.bf16.xpose.msra.mxu0 0
    %2038 = vmatprep.subr.bf16.mxu0 0
    %2039 = vmatpush1.bf16.xpose.msra.mxu0 0
    %2040 = vmatprep.subr.bf16.mxu0 0
    %2041 = vmatpush1.bf16.xpose.msra.mxu0 %v2024
    %2042 = vmatprep.subr.bf16.mxu0 0
    %2043 = vmatpush2.bf16.xpose.msra.mxu0 0
    %2044 = vmatprep.subr.bf16.mxu0 0
    %2045 = vmatpush2.bf16.xpose.msra.mxu0 0
    %2046 = vmatprep.subr.bf16.mxu0 0
    %2047 = vmatpush2.bf16.xpose.msra.mxu0 0
    %2048 = vmatprep.subr.bf16.mxu0 0
    %2049 = vmatpush2.bf16.xpose.msra.mxu0 0
    %2050 = vmatprep.subr.bf16.mxu0 0
    %2051 = vmatpush2.bf16.xpose.msra.mxu0 0
    %2052 = vmatprep.subr.bf16.mxu0 0
    %2053 = vmatpush2.bf16.xpose.msra.mxu0 0
    %2054 = vmatprep.subr.bf16.mxu0 0
    %2055 = vmatpush2.bf16.xpose.msra.mxu0 0
    %2056 = vmatprep.subr.bf16.mxu0 0
    %2057 = vmatpush2.bf16.xpose.msra.mxu0 0
    %2058 = vmatprep.mubr.bf16.mxu0 0
    %2059 = vmatmul.mubr.bf16.gmra.mxu0 %v2021
    %v2060 = vpop.f32.mrf.mxu0
    %v2061 = vadd.f32 0.0, %v2060
    %v2062 = vpop.f32.mrf.mxu0
    %v2063 = vpop.f32.mrf.mxu0
    %v2064 = vadd.f32 0.0, %v2063
    %v2065 = vpop.f32.mrf.mxu0
    %2066 = vdwg.mxu0
    %2067 = vrot.lane.b32.xlu0 %v517, 32
    %v2068 = vpop.permute.xlu0 %2067
    %2069 = vrot.lane.b32.xlu0 %v521, 32
    %v2070 = vpop.permute.xlu0 %2069
    %v2072 = vsel %vm527, %v2068, 0
    %v2075 = vsel %vm527, %v2070, 0
    %2077 = vmatprep.subr.bf16.mxu0 0
    %2078 = vmatpush1.bf16.xpose.msra.mxu0 0
    %2079 = vmatprep.subr.bf16.mxu0 0
    %2080 = vmatpush1.bf16.xpose.msra.mxu0 0
    %2081 = vmatprep.subr.bf16.mxu0 0
    %2082 = vmatpush1.bf16.xpose.msra.mxu0 0
    %2083 = vmatprep.subr.bf16.mxu0 0
    %2084 = vmatpush1.bf16.xpose.msra.mxu0 0
    %2085 = vmatprep.subr.bf16.mxu0 0
    %2086 = vmatpush1.bf16.xpose.msra.mxu0 0
    %2087 = vmatprep.subr.bf16.mxu0 0
    %2088 = vmatpush1.bf16.xpose.msra.mxu0 0
    %2089 = vmatprep.subr.bf16.mxu0 0
    %2090 = vmatpush1.bf16.xpose.msra.mxu0 0
    %2091 = vmatprep.subr.bf16.mxu0 0
    %2092 = vmatpush1.bf16.xpose.msra.mxu0 %v2075
    %2093 = vmatprep.subr.bf16.mxu0 0
    %2094 = vmatpush2.bf16.xpose.msra.mxu0 0
    %2095 = vmatprep.subr.bf16.mxu0 0
    %2096 = vmatpush2.bf16.xpose.msra.mxu0 0
    %2097 = vmatprep.subr.bf16.mxu0 0
    %2098 = vmatpush2.bf16.xpose.msra.mxu0 0
    %2099 = vmatprep.subr.bf16.mxu0 0
    %2100 = vmatpush2.bf16.xpose.msra.mxu0 0
    %2101 = vmatprep.subr.bf16.mxu0 0
    %2102 = vmatpush2.bf16.xpose.msra.mxu0 0
    %2103 = vmatprep.subr.bf16.mxu0 0
    %2104 = vmatpush2.bf16.xpose.msra.mxu0 0
    %2105 = vmatprep.subr.bf16.mxu0 0
    %2106 = vmatpush2.bf16.xpose.msra.mxu0 0
    %2107 = vmatprep.subr.bf16.mxu0 0
    %2108 = vmatpush2.bf16.xpose.msra.mxu0 0
    %2109 = vmatprep.mubr.bf16.mxu0 0
    %2110 = vmatmul.mubr.bf16.gmra.mxu0 %v2072
    %v2111 = vpop.f32.mrf.mxu0
    %v2112 = vadd.f32 0.0, %v2111
    %v2113 = vpop.f32.mrf.mxu0
    %v2114 = vpop.f32.mrf.mxu0
    %v2115 = vadd.f32 0.0, %v2114
    %v2116 = vpop.f32.mrf.mxu0
    %2117 = vdwg.mxu0
    %2118 = vrot.lane.b32.xlu0 %v518, 32
    %v2119 = vpop.permute.xlu0 %2118
    %2120 = vrot.lane.b32.xlu0 %v522, 32
    %v2121 = vpop.permute.xlu0 %2120
    %v2123 = vsel %vm527, %v2119, 0
    %v2126 = vsel %vm527, %v2121, 0
    %2128 = vmatprep.subr.bf16.mxu0 0
    %2129 = vmatpush1.bf16.xpose.msra.mxu0 0
    %2130 = vmatprep.subr.bf16.mxu0 0
    %2131 = vmatpush1.bf16.xpose.msra.mxu0 0
    %2132 = vmatprep.subr.bf16.mxu0 0
    %2133 = vmatpush1.bf16.xpose.msra.mxu0 0
    %2134 = vmatprep.subr.bf16.mxu0 0
    %2135 = vmatpush1.bf16.xpose.msra.mxu0 0
    %2136 = vmatprep.subr.bf16.mxu0 0
    %2137 = vmatpush1.bf16.xpose.msra.mxu0 0
    %2138 = vmatprep.subr.bf16.mxu0 0
    %2139 = vmatpush1.bf16.xpose.msra.mxu0 0
    %2140 = vmatprep.subr.bf16.mxu0 0
    %2141 = vmatpush1.bf16.xpose.msra.mxu0 0
    %2142 = vmatprep.subr.bf16.mxu0 0
    %2143 = vmatpush1.bf16.xpose.msra.mxu0 %v2126
    %2144 = vmatprep.subr.bf16.mxu0 0
    %2145 = vmatpush2.bf16.xpose.msra.mxu0 0
    %2146 = vmatprep.subr.bf16.mxu0 0
    %2147 = vmatpush2.bf16.xpose.msra.mxu0 0
    %2148 = vmatprep.subr.bf16.mxu0 0
    %2149 = vmatpush2.bf16.xpose.msra.mxu0 0
    %2150 = vmatprep.subr.bf16.mxu0 0
    %2151 = vmatpush2.bf16.xpose.msra.mxu0 0
    %2152 = vmatprep.subr.bf16.mxu0 0
    %2153 = vmatpush2.bf16.xpose.msra.mxu0 0
    %2154 = vmatprep.subr.bf16.mxu0 0
    %2155 = vmatpush2.bf16.xpose.msra.mxu0 0
    %2156 = vmatprep.subr.bf16.mxu0 0
    %2157 = vmatpush2.bf16.xpose.msra.mxu0 0
    %2158 = vmatprep.subr.bf16.mxu0 0
    %2159 = vmatpush2.bf16.xpose.msra.mxu0 0
    %2160 = vmatprep.mubr.bf16.mxu0 0
    %2161 = vmatmul.mubr.bf16.gmra.mxu0 %v2123
    %v2162 = vpop.f32.mrf.mxu0
    %v2163 = vadd.f32 0.0, %v2162
    %v2164 = vpop.f32.mrf.mxu0
    %v2165 = vpop.f32.mrf.mxu0
    %v2166 = vadd.f32 0.0, %v2165
    %v2167 = vpop.f32.mrf.mxu0
    %2168 = vdwg.mxu0
    %v2169 = vsel %vm716, %v2010, -inf
    %2170 = vmax.xlane.f32.xlu0 %v2169
    %v2171 = vpop.xlane.xlu0 %2170
    %v2172 = vsel %vm716, %v2013, -inf
    %2173 = vmax.xlane.f32.xlu0 %v2172
    %v2174 = vpop.xlane.xlu0 %2173
    %v2175 = vsel %vm716, %v2061, -inf
    %2176 = vmax.xlane.f32.xlu0 %v2175
    %v2177 = vpop.xlane.xlu0 %2176
    %v2178 = vsel %vm716, %v2064, -inf
    %2179 = vmax.xlane.f32.xlu0 %v2178
    %v2180 = vpop.xlane.xlu0 %2179
    %v2181 = vsel %vm716, %v2112, -inf
    %2182 = vmax.xlane.f32.xlu0 %v2181
    %v2183 = vpop.xlane.xlu0 %2182
    %v2184 = vsel %vm716, %v2115, -inf
    %2185 = vmax.xlane.f32.xlu0 %v2184
    %v2186 = vpop.xlane.xlu0 %2185
    %v2187 = vsel %vm716, %v2163, -inf
    %2188 = vmax.xlane.f32.xlu0 %v2187
    %v2189 = vpop.xlane.xlu0 %2188
    %v2190 = vsel %vm716, %v2166, -inf
    %2191 = vmax.xlane.f32.xlu0 %v2190
    %v2192 = vpop.xlane.xlu0 %2191
    %v2193 = vsub.f32 %v2010, %v2171
    %v2194 = vsub.f32 %v2013, %v2174
    %v2195 = vsub.f32 %v2061, %v2177
    %v2196 = vsub.f32 %v2064, %v2180
    %v2197 = vsub.f32 %v2112, %v2183
    %v2198 = vsub.f32 %v2115, %v2186
    %v2199 = vsub.f32 %v2163, %v2189
    %v2200 = vsub.f32 %v2166, %v2192
    %v2201 = vmul.f32 %v2193, 1.442695
    %v2202 = vpow.pop %v2201
    %v2203 = vmul.f32 %v2194, 1.442695
    %v2204 = vpow.pop %v2203
    %v2205 = vmul.f32 %v2195, 1.442695
    %v2206 = vpow.pop %v2205
    %v2207 = vmul.f32 %v2196, 1.442695
    %v2208 = vpow.pop %v2207
    %v2209 = vmul.f32 %v2197, 1.442695
    %v2210 = vpow.pop %v2209
    %v2211 = vmul.f32 %v2198, 1.442695
    %v2212 = vpow.pop %v2211
    %v2213 = vmul.f32 %v2199, 1.442695
    %v2214 = vpow.pop %v2213
    %v2215 = vmul.f32 %v2200, 1.442695
    %v2216 = vpow.pop %v2215
    %v2217 = vsel %vm716, %v2202, 0.0
    %2218 = vadd.xlane.f32.xlu0 %v2217
    %v2219 = vpop.xlane.xlu0 %2218
    %v2220 = vsel %vm716, %v2204, 0.0
    %2221 = vadd.xlane.f32.xlu0 %v2220
    %v2222 = vpop.xlane.xlu0 %2221
    %v2223 = vsel %vm716, %v2206, 0.0
    %2224 = vadd.xlane.f32.xlu0 %v2223
    %v2225 = vpop.xlane.xlu0 %2224
    %v2226 = vsel %vm716, %v2208, 0.0
    %2227 = vadd.xlane.f32.xlu0 %v2226
    %v2228 = vpop.xlane.xlu0 %2227
    %v2229 = vsel %vm716, %v2210, 0.0
    %2230 = vadd.xlane.f32.xlu0 %v2229
    %v2231 = vpop.xlane.xlu0 %2230
    %v2232 = vsel %vm716, %v2212, 0.0
    %2233 = vadd.xlane.f32.xlu0 %v2232
    %v2234 = vpop.xlane.xlu0 %2233
    %v2235 = vsel %vm716, %v2214, 0.0
    %2236 = vadd.xlane.f32.xlu0 %v2235
    %v2237 = vpop.xlane.xlu0 %2236
    %v2238 = vsel %vm716, %v2216, 0.0
    %2239 = vadd.xlane.f32.xlu0 %v2238
    %v2240 = vpop.xlane.xlu0 %2239
    %v2241 = vrcp.pop %v2219
    %v2242 = vrcp.pop %v2222
    %v2243 = vrcp.pop %v2225
    %v2244 = vrcp.pop %v2228
    %v2245 = vrcp.pop %v2231
    %v2246 = vrcp.pop %v2234
    %v2247 = vrcp.pop %v2237
    %v2248 = vrcp.pop %v2240
    %v2249 = vmul.f32 %v2202, %v2241
    %v2250 = vmul.f32 %v2204, %v2242
    %v2251 = vmul.f32 %v2206, %v2243
    %v2252 = vmul.f32 %v2208, %v2244
    %v2253 = vmul.f32 %v2210, %v2245
    %v2254 = vmul.f32 %v2212, %v2246
    %v2255 = vmul.f32 %v2214, %v2247
    %v2256 = vmul.f32 %v2216, %v2248
    %v2257 = vpack.c.bf16 %v2250, %v2249
    %v2258 = vpack.c.bf16 %v2252, %v2251
    %v2259 = vpack.c.bf16 %v2254, %v2253
    %v2260 = vpack.c.bf16 %v2256, %v2255
    %2261 = vrot.lane.b32.xlu0 %v523, 32
    %v2262 = vpop.permute.xlu0 %2261
    %v2265 = vsel %vm716, %v2257, 0
    %2267 = vmatprep.subr.bf16.mxu0 0
    %2268 = vmatpush1.bf16.msra.mxu0 0
    %2269 = vmatprep.subr.bf16.mxu0 0
    %2270 = vmatpush1.bf16.msra.mxu0 0
    %2271 = vmatprep.subr.bf16.mxu0 0
    %2272 = vmatpush1.bf16.msra.mxu0 0
    %2273 = vmatprep.subr.bf16.mxu0 0
    %2274 = vmatpush1.bf16.msra.mxu0 0
    %2275 = vmatprep.subr.bf16.mxu0 0
    %2276 = vmatpush1.bf16.msra.mxu0 0
    %2277 = vmatprep.subr.bf16.mxu0 0
    %2278 = vmatpush1.bf16.msra.mxu0 0
    %2279 = vmatprep.subr.bf16.mxu0 0
    %2280 = vmatpush1.bf16.msra.mxu0 0
    %2281 = vmatprep.subr.bf16.mxu0 0
    %2282 = vmatpush1.bf16.msra.mxu0 %v2262
    %2283 = vmatprep.subr.bf16.mxu0 0
    %2284 = vmatpush2.bf16.msra.mxu0 0
    %2285 = vmatprep.subr.bf16.mxu0 0
    %2286 = vmatpush2.bf16.msra.mxu0 0
    %2287 = vmatprep.subr.bf16.mxu0 0
    %2288 = vmatpush2.bf16.msra.mxu0 0
    %2289 = vmatprep.subr.bf16.mxu0 0
    %2290 = vmatpush2.bf16.msra.mxu0 0
    %2291 = vmatprep.subr.bf16.mxu0 0
    %2292 = vmatpush2.bf16.msra.mxu0 0
    %2293 = vmatprep.subr.bf16.mxu0 0
    %2294 = vmatpush2.bf16.msra.mxu0 0
    %2295 = vmatprep.subr.bf16.mxu0 0
    %2296 = vmatpush2.bf16.msra.mxu0 0
    %2297 = vmatprep.subr.bf16.mxu0 0
    %2298 = vmatpush2.bf16.msra.mxu0 0
    %2299 = vmatprep.mubr.bf16.mxu0 0
    %2300 = vmatmul.mubr.bf16.gmra.mxu0 %v2265
    %v2301 = vpop.f32.mrf.mxu0
    %v2302 = vadd.f32 0.0, %v2301
    %v2303 = vpop.f32.mrf.mxu0
    %v2304 = vpop.f32.mrf.mxu0
    %v2305 = vadd.f32 0.0, %v2304
    %v2306 = vpop.f32.mrf.mxu0
    %2307 = vdwg.mxu0
    %2308 = vrot.lane.b32.xlu0 %v524, 32
    %v2309 = vpop.permute.xlu0 %2308
    %v2312 = vsel %vm716, %v2258, 0
    %2314 = vmatprep.subr.bf16.mxu0 0
    %2315 = vmatpush1.bf16.msra.mxu0 0
    %2316 = vmatprep.subr.bf16.mxu0 0
    %2317 = vmatpush1.bf16.msra.mxu0 0
    %2318 = vmatprep.subr.bf16.mxu0 0
    %2319 = vmatpush1.bf16.msra.mxu0 0
    %2320 = vmatprep.subr.bf16.mxu0 0
    %2321 = vmatpush1.bf16.msra.mxu0 0
    %2322 = vmatprep.subr.bf16.mxu0 0
    %2323 = vmatpush1.bf16.msra.mxu0 0
    %2324 = vmatprep.subr.bf16.mxu0 0
    %2325 = vmatpush1.bf16.msra.mxu0 0
    %2326 = vmatprep.subr.bf16.mxu0 0
    %2327 = vmatpush1.bf16.msra.mxu0 0
    %2328 = vmatprep.subr.bf16.mxu0 0
    %2329 = vmatpush1.bf16.msra.mxu0 %v2309
    %2330 = vmatprep.subr.bf16.mxu0 0
    %2331 = vmatpush2.bf16.msra.mxu0 0
    %2332 = vmatprep.subr.bf16.mxu0 0
    %2333 = vmatpush2.bf16.msra.mxu0 0
    %2334 = vmatprep.subr.bf16.mxu0 0
    %2335 = vmatpush2.bf16.msra.mxu0 0
    %2336 = vmatprep.subr.bf16.mxu0 0
    %2337 = vmatpush2.bf16.msra.mxu0 0
    %2338 = vmatprep.subr.bf16.mxu0 0
    %2339 = vmatpush2.bf16.msra.mxu0 0
    %2340 = vmatprep.subr.bf16.mxu0 0
    %2341 = vmatpush2.bf16.msra.mxu0 0
    %2342 = vmatprep.subr.bf16.mxu0 0
    %2343 = vmatpush2.bf16.msra.mxu0 0
    %2344 = vmatprep.subr.bf16.mxu0 0
    %2345 = vmatpush2.bf16.msra.mxu0 0
    %2346 = vmatprep.mubr.bf16.mxu0 0
    %2347 = vmatmul.mubr.bf16.gmra.mxu0 %v2312
    %v2348 = vpop.f32.mrf.mxu0
    %v2349 = vadd.f32 0.0, %v2348
    %v2350 = vpop.f32.mrf.mxu0
    %v2351 = vpop.f32.mrf.mxu0
    %v2352 = vadd.f32 0.0, %v2351
    %v2353 = vpop.f32.mrf.mxu0
    %2354 = vdwg.mxu0
    %2355 = vrot.lane.b32.xlu0 %v525, 32
    %v2356 = vpop.permute.xlu0 %2355
    %v2359 = vsel %vm716, %v2259, 0
    %2361 = vmatprep.subr.bf16.mxu0 0
    %2362 = vmatpush1.bf16.msra.mxu0 0
    %2363 = vmatprep.subr.bf16.mxu0 0
    %2364 = vmatpush1.bf16.msra.mxu0 0
    %2365 = vmatprep.subr.bf16.mxu0 0
    %2366 = vmatpush1.bf16.msra.mxu0 0
    %2367 = vmatprep.subr.bf16.mxu0 0
    %2368 = vmatpush1.bf16.msra.mxu0 0
    %2369 = vmatprep.subr.bf16.mxu0 0
    %2370 = vmatpush1.bf16.msra.mxu0 0
    %2371 = vmatprep.subr.bf16.mxu0 0
    %2372 = vmatpush1.bf16.msra.mxu0 0
    %2373 = vmatprep.subr.bf16.mxu0 0
    %2374 = vmatpush1.bf16.msra.mxu0 0
    %2375 = vmatprep.subr.bf16.mxu0 0
    %2376 = vmatpush1.bf16.msra.mxu0 %v2356
    %2377 = vmatprep.subr.bf16.mxu0 0
    %2378 = vmatpush2.bf16.msra.mxu0 0
    %2379 = vmatprep.subr.bf16.mxu0 0
    %2380 = vmatpush2.bf16.msra.mxu0 0
    %2381 = vmatprep.subr.bf16.mxu0 0
    %2382 = vmatpush2.bf16.msra.mxu0 0
    %2383 = vmatprep.subr.bf16.mxu0 0
    %2384 = vmatpush2.bf16.msra.mxu0 0
    %2385 = vmatprep.subr.bf16.mxu0 0
    %2386 = vmatpush2.bf16.msra.mxu0 0
    %2387 = vmatprep.subr.bf16.mxu0 0
    %2388 = vmatpush2.bf16.msra.mxu0 0
    %2389 = vmatprep.subr.bf16.mxu0 0
    %2390 = vmatpush2.bf16.msra.mxu0 0
    %2391 = vmatprep.subr.bf16.mxu0 0
    %2392 = vmatpush2.bf16.msra.mxu0 0
    %2393 = vmatprep.mubr.bf16.mxu0 0
    %2394 = vmatmul.mubr.bf16.gmra.mxu0 %v2359
    %v2395 = vpop.f32.mrf.mxu0
    %v2396 = vadd.f32 0.0, %v2395
    %v2397 = vpop.f32.mrf.mxu0
    %v2398 = vpop.f32.mrf.mxu0
    %v2399 = vadd.f32 0.0, %v2398
    %v2400 = vpop.f32.mrf.mxu0
    %2401 = vdwg.mxu0
    %2402 = vrot.lane.b32.xlu0 %v526, 32
    %v2403 = vpop.permute.xlu0 %2402
    %v2406 = vsel %vm716, %v2260, 0
    %2408 = vmatprep.subr.bf16.mxu0 0
    %2409 = vmatpush1.bf16.msra.mxu0 0
    %2410 = vmatprep.subr.bf16.mxu0 0
    %2411 = vmatpush1.bf16.msra.mxu0 0
    %2412 = vmatprep.subr.bf16.mxu0 0
    %2413 = vmatpush1.bf16.msra.mxu0 0
    %2414 = vmatprep.subr.bf16.mxu0 0
    %2415 = vmatpush1.bf16.msra.mxu0 0
    %2416 = vmatprep.subr.bf16.mxu0 0
    %2417 = vmatpush1.bf16.msra.mxu0 0
    %2418 = vmatprep.subr.bf16.mxu0 0
    %2419 = vmatpush1.bf16.msra.mxu0 0
    %2420 = vmatprep.subr.bf16.mxu0 0
    %2421 = vmatpush1.bf16.msra.mxu0 0
    %2422 = vmatprep.subr.bf16.mxu0 0
    %2423 = vmatpush1.bf16.msra.mxu0 %v2403
    %2424 = vmatprep.subr.bf16.mxu0 0
    %2425 = vmatpush2.bf16.msra.mxu0 0
    %2426 = vmatprep.subr.bf16.mxu0 0
    %2427 = vmatpush2.bf16.msra.mxu0 0
    %2428 = vmatprep.subr.bf16.mxu0 0
    %2429 = vmatpush2.bf16.msra.mxu0 0
    %2430 = vmatprep.subr.bf16.mxu0 0
    %2431 = vmatpush2.bf16.msra.mxu0 0
    %2432 = vmatprep.subr.bf16.mxu0 0
    %2433 = vmatpush2.bf16.msra.mxu0 0
    %2434 = vmatprep.subr.bf16.mxu0 0
    %2435 = vmatpush2.bf16.msra.mxu0 0
    %2436 = vmatprep.subr.bf16.mxu0 0
    %2437 = vmatpush2.bf16.msra.mxu0 0
    %2438 = vmatprep.subr.bf16.mxu0 0
    %2439 = vmatpush2.bf16.msra.mxu0 0
    %2440 = vmatprep.mubr.bf16.mxu0 0
    %2441 = vmatmul.mubr.bf16.gmra.mxu0 %v2406
    %v2442 = vpop.f32.mrf.mxu0
    %v2443 = vadd.f32 0.0, %v2442
    %v2444 = vpop.f32.mrf.mxu0
    %v2445 = vpop.f32.mrf.mxu0
    %v2446 = vadd.f32 0.0, %v2445
    %v2447 = vpop.f32.mrf.mxu0
    %2448 = vdwg.mxu0
    %2457 = vrot.lane.b32.xlu0 %v1331, 32
    %v2458 = vpop.permute.xlu0 %2457
    %2459 = vrot.lane.b32.xlu0 %v1334, 32
    %v2460 = vpop.permute.xlu0 %2459
    %2461 = vrot.lane.b32.xlu0 %v1379, 32
    %v2462 = vpop.permute.xlu0 %2461
    %2463 = vrot.lane.b32.xlu0 %v1382, 32
    %v2464 = vpop.permute.xlu0 %2463
    %2465 = vrot.lane.b32.xlu0 %v1427, 32
    %v2466 = vpop.permute.xlu0 %2465
    %2467 = vrot.lane.b32.xlu0 %v1430, 32
    %v2468 = vpop.permute.xlu0 %2467
    %2469 = vrot.lane.b32.xlu0 %v1475, 32
    %v2470 = vpop.permute.xlu0 %2469
    %2471 = vrot.lane.b32.xlu0 %v1478, 32
    %v2472 = vpop.permute.xlu0 %2471
    %2489 = vrot.lane.b32.xlu0 %v1818, 64
    %v2490 = vpop.permute.xlu0 %2489
    %2491 = vrot.lane.b32.xlu0 %v1821, 64
    %v2492 = vpop.permute.xlu0 %2491
    %2493 = vrot.lane.b32.xlu0 %v1865, 64
    %v2494 = vpop.permute.xlu0 %2493
    %2495 = vrot.lane.b32.xlu0 %v1868, 64
    %v2496 = vpop.permute.xlu0 %2495
    %2497 = vrot.lane.b32.xlu0 %v1912, 64
    %v2498 = vpop.permute.xlu0 %2497
    %2499 = vrot.lane.b32.xlu0 %v1915, 64
    %v2500 = vpop.permute.xlu0 %2499
    %2501 = vrot.lane.b32.xlu0 %v1959, 64
    %v2502 = vpop.permute.xlu0 %2501
    %2503 = vrot.lane.b32.xlu0 %v1962, 64
    %v2504 = vpop.permute.xlu0 %2503
    %2521 = vrot.lane.b32.xlu0 %v2302, 96
    %v2522 = vpop.permute.xlu0 %2521
    %2523 = vrot.lane.b32.xlu0 %v2305, 96
    %v2524 = vpop.permute.xlu0 %2523
    %2525 = vrot.lane.b32.xlu0 %v2349, 96
    %v2526 = vpop.permute.xlu0 %2525
    %2527 = vrot.lane.b32.xlu0 %v2352, 96
    %v2528 = vpop.permute.xlu0 %2527
    %2529 = vrot.lane.b32.xlu0 %v2396, 96
    %v2530 = vpop.permute.xlu0 %2529
    %2531 = vrot.lane.b32.xlu0 %v2399, 96
    %v2532 = vpop.permute.xlu0 %2531
    %2533 = vrot.lane.b32.xlu0 %v2443, 96
    %v2534 = vpop.permute.xlu0 %2533
    %2535 = vrot.lane.b32.xlu0 %v2446, 96
    %v2536 = vpop.permute.xlu0 %2535
    %v2545 = vsel %vm527, %v847, %v2458
    %v2546 = vsel %vm527, %v850, %v2460
    %v2547 = vsel %vm527, %v891, %v2462
    %v2548 = vsel %vm527, %v894, %v2464
    %v2549 = vsel %vm527, %v935, %v2466
    %v2550 = vsel %vm527, %v938, %v2468
    %v2551 = vsel %vm527, %v979, %v2470
    %v2552 = vsel %vm527, %v982, %v2472
    %vm2553 = vcmask 523264
    %v2554 = vsel %vm2553, %v2545, %v2490
    %v2555 = vsel %vm2553, %v2546, %v2492
    %v2556 = vsel %vm2553, %v2547, %v2494
    %v2557 = vsel %vm2553, %v2548, %v2496
    %v2558 = vsel %vm2553, %v2549, %v2498
    %v2559 = vsel %vm2553, %v2550, %v2500
    %v2560 = vsel %vm2553, %v2551, %v2502
    %v2561 = vsel %vm2553, %v2552, %v2504
    %vm2562 = vcmask 785408
    %v2563 = vsel %vm2562, %v2554, %v2522
    %v2564 = vsel %vm2562, %v2555, %v2524
    %v2565 = vsel %vm2562, %v2556, %v2526
    %v2566 = vsel %vm2562, %v2557, %v2528
    %v2567 = vsel %vm2562, %v2558, %v2530
    %v2568 = vsel %vm2562, %v2559, %v2532
    %v2569 = vsel %vm2562, %v2560, %v2534
    %v2570 = vsel %vm2562, %v2561, %v2536
    %v2571 = vpack.c.bf16 %v2564, %v2563
    %v2572 = vpack.c.bf16 %v2566, %v2565
    %v2573 = vpack.c.bf16 %v2568, %v2567
    %v2574 = vpack.c.bf16 %v2570, %v2569
    %v2575 = vld [vmem:[#allocation7] sm:$0xf]
    %v2576 = vld [vmem:[#allocation7 + $0x4] sm:$0xf]
    %v2577 = vld [vmem:[#allocation7 + $0x8] sm:$0xf]
    %v2578 = vld [vmem:[#allocation7 + $0xc] sm:$0xf]
    %v2579 = vld [vmem:[#allocation7 + $0x10] sm:$0xf]
    %v2580 = vld [vmem:[#allocation7 + $0x14] sm:$0xf]
    %v2581 = vld [vmem:[#allocation7 + $0x18] sm:$0xf]
    %v2582 = vld [vmem:[#allocation7 + $0x1c] sm:$0xf]
    %v2583 = vld [vmem:[#allocation7 + $0x20] sm:$0xf]
    %v2584 = vld [vmem:[#allocation7 + $0x24] sm:$0xf]
    %v2585 = vld [vmem:[#allocation7 + $0x28] sm:$0xf]
    %v2586 = vld [vmem:[#allocation7 + $0x2c] sm:$0xf]
    %v2587 = vld [vmem:[#allocation7 + $0x30] sm:$0xf]
    %v2588 = vld [vmem:[#allocation7 + $0x34] sm:$0xf]
    %v2589 = vld [vmem:[#allocation7 + $0x38] sm:$0xf]
    %v2590 = vld [vmem:[#allocation7 + $0x3c] sm:$0xf]
    %v2591 = vld [vmem:[%s6] sm:$0x1]
    %v2593 = vlaneseq
    %v2594 = vshrl.u32 %v2593, 7
    %v2595 = vsub.s32 0, %v2594
    %v2596 = vrot.slane %v2591, %v2595
    %v2614 = vunpack.c.l.b16 %v2575
    %v2615 = vunpack.c.l.b16 %v2576
    %v2616 = vunpack.c.l.b16 %v2577
    %v2617 = vunpack.c.l.b16 %v2578
    %v2618 = vunpack.c.l.b16 %v2579
    %v2619 = vunpack.c.l.b16 %v2580
    %v2620 = vunpack.c.l.b16 %v2581
    %v2621 = vunpack.c.l.b16 %v2582
    %v2622 = vunpack.c.l.b16 %v2583
    %v2623 = vunpack.c.l.b16 %v2584
    %v2624 = vunpack.c.l.b16 %v2585
    %v2625 = vunpack.c.l.b16 %v2586
    %v2626 = vunpack.c.l.b16 %v2587
    %v2627 = vunpack.c.l.b16 %v2588
    %v2628 = vunpack.c.l.b16 %v2589
    %v2629 = vunpack.c.l.b16 %v2590
    %v2630 = vpack.c.b16 %v2615, %v2614
    %v2631 = vpack.c.b16 %v2617, %v2616
    %v2632 = vpack.c.b16 %v2619, %v2618
    %v2633 = vpack.c.b16 %v2621, %v2620
    %v2634 = vpack.c.b16 %v2623, %v2622
    %v2635 = vpack.c.b16 %v2625, %v2624
    %v2636 = vpack.c.b16 %v2627, %v2626
    %v2637 = vpack.c.b16 %v2629, %v2628
    %2646 = vmatprep.subr.bf16.mxu0 0
    %2647 = vmatpush1.bf16.msra.mxu0 %v2637
    %2648 = vmatprep.subr.bf16.mxu0 0
    %2649 = vmatpush1.bf16.msra.mxu0 %v2636
    %2650 = vmatprep.subr.bf16.mxu0 0
    %2651 = vmatpush1.bf16.msra.mxu0 %v2635
    %2652 = vmatprep.subr.bf16.mxu0 0
    %2653 = vmatpush1.bf16.msra.mxu0 %v2634
    %2654 = vmatprep.subr.bf16.mxu0 0
    %2655 = vmatpush1.bf16.msra.mxu0 %v2633
    %2656 = vmatprep.subr.bf16.mxu0 0
    %2657 = vmatpush1.bf16.msra.mxu0 %v2632
    %2658 = vmatprep.subr.bf16.mxu0 0
    %2659 = vmatpush1.bf16.msra.mxu0 %v2631
    %2660 = vmatprep.subr.bf16.mxu0 0
    %2661 = vmatpush1.bf16.msra.mxu0 %v2630
    %2662 = vmatprep.subr.bf16.mxu0 0
    %2663 = vmatpush2.bf16.msra.mxu0 0
    %2664 = vmatprep.subr.bf16.mxu0 0
    %2665 = vmatpush2.bf16.msra.mxu0 0
    %2666 = vmatprep.subr.bf16.mxu0 0
    %2667 = vmatpush2.bf16.msra.mxu0 0
    %2668 = vmatprep.subr.bf16.mxu0 0
    %2669 = vmatpush2.bf16.msra.mxu0 0
    %2670 = vmatprep.subr.bf16.mxu0 0
    %2671 = vmatpush2.bf16.msra.mxu0 0
    %2672 = vmatprep.subr.bf16.mxu0 0
    %2673 = vmatpush2.bf16.msra.mxu0 0
    %2674 = vmatprep.subr.bf16.mxu0 0
    %2675 = vmatpush2.bf16.msra.mxu0 0
    %2676 = vmatprep.subr.bf16.mxu0 0
    %2677 = vmatpush2.bf16.msra.mxu0 0
    %2678 = vmatprep.mubr.bf16.mxu0 0
    %2679 = vmatmul.mubr.bf16.gmra.mxu0 %v2571
    %v2680 = vpop.f32.mrf.mxu0
    %v2681 = vadd.f32 %v2596, %v2680
    %v2682 = vpop.f32.mrf.mxu0
    %v2683 = vpop.f32.mrf.mxu0
    %v2684 = vadd.f32 %v2596, %v2683
    %v2685 = vpop.f32.mrf.mxu0
    %2686 = vmatprep.mubr.bf16.mxu0 0
    %2687 = vmatmul.mubr.bf16.gmra.mxu0 %v2572
    %v2688 = vpop.f32.mrf.mxu0
    %v2689 = vadd.f32 %v2596, %v2688
    %v2690 = vpop.f32.mrf.mxu0
    %v2691 = vpop.f32.mrf.mxu0
    %v2692 = vadd.f32 %v2596, %v2691
    %v2693 = vpop.f32.mrf.mxu0
    %2694 = vmatprep.mubr.bf16.mxu0 0
    %2695 = vmatmul.mubr.bf16.gmra.mxu0 %v2573
    %v2696 = vpop.f32.mrf.mxu0
    %v2697 = vadd.f32 %v2596, %v2696
    %v2698 = vpop.f32.mrf.mxu0
    %v2699 = vpop.f32.mrf.mxu0
    %v2700 = vadd.f32 %v2596, %v2699
    %v2701 = vpop.f32.mrf.mxu0
    %2702 = vmatprep.mubr.bf16.mxu0 0
    %2703 = vmatmul.mubr.bf16.gmra.mxu0 %v2574
    %v2704 = vpop.f32.mrf.mxu0
    %v2705 = vadd.f32 %v2596, %v2704
    %v2706 = vpop.f32.mrf.mxu0
    %v2707 = vpop.f32.mrf.mxu0
    %v2708 = vadd.f32 %v2596, %v2707
    %v2709 = vpop.f32.mrf.mxu0
    %2710 = vdwg.mxu0
    %2711 = vst [vmem:[#allocation8] sm:$0xff] %v2681
    %2712 = vst [vmem:[#allocation8 + $0x8] sm:$0xff] %v2684
    %2713 = vst [vmem:[#allocation8 + $0x10] sm:$0xff] %v2689
    %2714 = vst [vmem:[#allocation8 + $0x18] sm:$0xff] %v2692
    %2715 = vst [vmem:[#allocation8 + $0x20] sm:$0xff] %v2697
    %2716 = vst [vmem:[#allocation8 + $0x28] sm:$0xff] %v2700
    %2717 = vst [vmem:[#allocation8 + $0x30] sm:$0xff] %v2705
    %2718 = vst [vmem:[#allocation8 + $0x38] sm:$0xff] %v2708
    // Predicated region
    $region42: #{tpu_custom_call.1} parent=1 // pred_check
      _
    $region43: #{tpu_custom_call.1} parent=1 // pred_check_branch
      %2720 = sbr.rel (0) target = $region45
    $region44: #{tpu_custom_call.1} parent=1 // pred_region
      %s2722 = ssub.s32 1024, 1024
      %2723 = vsyncadd [#allocation4], %s2722
      %s2724 = sshll.u32 [#allocation8], 4
      %s2725 = int_to_ptr.vmem [resolvable:$true] %s2724
      %2730 = dma.vmem_to_hbm [thread:$0]  %s2725, 1024, %s7, [#allocation4], 128, 128, 8
    $region45: #{tpu_custom_call.1} parent=1 // pred_fallthru
      _
    // Predicated region
    $region46: #{tpu_custom_call.1} parent=1 // pred_check
      _
    $region47: #{tpu_custom_call.1} parent=1 // pred_check_branch
      %2732 = sbr.rel (0) target = $region49
    $region48: #{tpu_custom_call.1} parent=1 // pred_region
      %2733 = dma.done [#allocation4], 1024
    $region49: #{tpu_custom_call.1} parent=1 // pred_fallthru
      _
    %2734 = vsyncpa [#allocation3], 1
    %2735 = vsyncpa [#allocation6], 1
    %2736 = vsyncpa [#allocation4], 1

</llo_original>
